<compile_context>
chip_gen: v5e
topology: v5e:2x2
jax: 0.10.0
libtpu: 0.0.40
codegen_flags: <defaults>
</compile_context>

<pallas_src>
import functools

import jax
import jax.numpy as jnp
from jax.experimental import pallas as pl
from jax.experimental.pallas import tpu as pltpu


_INV_SQRT2 = 0.7071067811865476


def _round_up(x, m):
    return (x + m - 1) // m * m


def _erf_approx(x):
    """erf via Abramowitz & Stegun 7.1.26 (max abs error ~1.5e-7).

    Uses only mul/add/div/select (VPU) plus one exp (EUP), all of which lower
    cleanly in Mosaic -- avoids depending on a lax.erf lowering.
    """
    a1, a2, a3, a4, a5 = (0.254829592, -0.284496736, 1.421413741,
                          -1.453152027, 1.061405429)
    p = 0.3275911
    ax = jnp.abs(x)
    t = 1.0 / (1.0 + p * ax)
    poly = ((((a5 * t + a4) * t + a3) * t + a2) * t + a1) * t
    y = 1.0 - poly * jnp.exp(-(ax * ax))
    return jnp.where(x < 0.0, -y, y)


def _gelu(x, approximate):
    if approximate:
        # tanh-form GELU: transcendental lands on the otherwise-idle EUP slot,
        # cutting VALU work 2-3x, at ~1e-3 deviation from nn.GELU() default.
        return jax.nn.gelu(x, approximate=True)
    # Exact (erf) GELU, matching PyTorch nn.GELU() default to ~1.5e-7.
    return 0.5 * x * (1.0 + _erf_approx(x * _INV_SQRT2))


def _mlp_kernel(x_ref, w1_ref, b1_ref, w2_ref, b2_ref, o_ref, *,
                approximate_gelu, precision):
    # x_ref : (nb, Cin, TS)   w1_ref: (Ch, Cin)   b1_ref: (Ch, 1)
    # w2_ref: (Cout, Ch)      b2_ref: (Cout, 1)   o_ref : (nb, Cout, TS)
    w1 = w1_ref[...]
    b1 = b1_ref[...]
    w2 = w2_ref[...]
    b2 = b2_ref[...]
    for n in range(x_ref.shape[0]):        # static unroll over the batch block
        x = x_ref[n]                                               # (Cin, TS)
        h = jnp.dot(w1, x, preferred_element_type=jnp.float32,
                    precision=precision)                           # (Ch, TS)
        h = _gelu(h + b1, approximate_gelu)
        # Dropout with p=0.0 is identity.  # TODO(synk): no-op dropout elided
        y = jnp.dot(w2, h.astype(w2.dtype),
                    preferred_element_type=jnp.float32,
                    precision=precision)                           # (Cout, TS)
        o_ref[n] = (y + b2).astype(o_ref.dtype)


def _pick_blocks(N, Cin, Ch, Cout, HW, itemsize, tile_spatial):
    """Choose (batch_block nb, spatial_tile ts)."""
    # Spatial tile: multiple of 128, never larger than the 128-padded extent.
    ts = min(_round_up(tile_spatial, 128), _round_up(HW, 128))

    # Per-step VMEM: double-buffered x/out tiles + f32 hidden intermediates.
    # Budget 12 MiB so it fits v7x (32 MiB scoped / 64 MiB physical) with
    # double-buffering headroom; v5e/v6e have 128 MiB and just get bigger tiles.
    budget = 12 * 1024 * 1024

    def step_vmem(nb, t):
        io = 2 * nb * (Cin + Cout) * t * itemsize        # double-buffered tiles
        inter = nb * Ch * t * 2 * 4                      # h and gelu(h), f32
        return io + inter

    while ts > 128 and step_vmem(1, ts) > budget:
        ts -= 128

    # Batch block: pull several images into one grid step so each step moves a
    # reasonable number of bytes (target ~256 KiB of I/O) ...
    target_io = 256 * 1024
    io_per_img = (Cin + Cout) * ts * itemsize
    nb = max(1, min(N, target_io // max(io_per_img, 1)))
    while nb > 1 and step_vmem(nb, ts) > budget:
        nb -= 1
    # ... but keep >=2 grid steps so v7x's two TensorCores both get work.
    if pl.cdiv(HW, ts) == 1 and nb >= N and N > 1:
        nb = (N + 1) // 2
    # Use a divisor of N so every batch block is full (no partial batch tiles).
    while N % nb:
        nb -= 1
    return nb, ts


def mlp_forward(x_nchw, w1, b1, w2, b2, *, tile_spatial=2048,
                approximate_gelu=False):
    """Fused 1x1-conv MLP (Linear2d -> GELU -> Linear2d), drop=0.0.

    x_nchw: (N, Cin, H, W)
    w1: (Ch, Cin),  b1: (Ch,)     -- PyTorch nn.Linear layout (out, in)
    w2: (Cout, Ch), b2: (Cout,)
    """
    N, Cin, H, W = x_nchw.shape
    Ch = w1.shape[0]
    Cout = w2.shape[0]
    HW = H * W
    itemsize = jnp.dtype(x_nchw.dtype).itemsize

    nb, ts = _pick_blocks(N, Cin, Ch, Cout, HW, itemsize, tile_spatial)
    grid = (N // nb, pl.cdiv(HW, ts))

    # Free reshape (no transpose): spatial is already contiguous on the last axis.
    x_flat = x_nchw.reshape(N, Cin, HW)
    b1_2d = b1.reshape(Ch, 1)
    b2_2d = b2.reshape(Cout, 1)

    # Bit-faithful f32 contractions (kernel is HBM-bound, extra MXU passes are
    # hidden); bf16 inputs take the native single-pass path.
    precision = (jax.lax.Precision.HIGHEST
                 if x_nchw.dtype == jnp.float32 else None)

    kernel = functools.partial(_mlp_kernel,
                               approximate_gelu=approximate_gelu,
                               precision=precision)

    w_bytes = ((w1.size + b1.size) * jnp.dtype(w1.dtype).itemsize
               + (w2.size + b2.size) * jnp.dtype(w2.dtype).itemsize)
    cost = pl.CostEstimate(
        flops=2 * N * HW * (Cin * Ch + Ch * Cout),
        transcendentals=N * HW * Ch,             # one exp/tanh per hidden elem
        bytes_accessed=N * HW * (Cin + Cout) * itemsize + w_bytes,
    )

    out_flat = pl.pallas_call(
        kernel,
        out_shape=jax.ShapeDtypeStruct((N, Cout, HW), x_nchw.dtype),
        grid_spec=pltpu.PrefetchScalarGridSpec(
            num_scalar_prefetch=0,
            grid=grid,
            in_specs=[
                pl.BlockSpec((nb, Cin, ts), lambda n, s: (n, 0, s)),
                pl.BlockSpec((Ch, Cin), lambda n, s: (0, 0)),
                pl.BlockSpec((Ch, 1), lambda n, s: (0, 0)),
                pl.BlockSpec((Cout, Ch), lambda n, s: (0, 0)),
                pl.BlockSpec((Cout, 1), lambda n, s: (0, 0)),
            ],
            out_specs=pl.BlockSpec((nb, Cout, ts), lambda n, s: (n, 0, s)),
        ),
        compiler_params=pltpu.CompilerParams(
            # Every (batch-block, spatial-tile) step is independent.
            dimension_semantics=("parallel", "parallel"),
            vmem_limit_bytes=32 * 1024 * 1024,
        ),
        cost_estimate=cost,
    )(x_flat, w1, b1_2d, w2, b2_2d)

    return out_flat.reshape(N, Cout, H, W)


def _reference(x_nchw, w1, b1, w2, b2):
    # Pure-JAX reference matching the PyTorch module (weights in (out, in)),
    # true-f32 contractions and exact erf GELU.
    prec = jax.lax.Precision.HIGHEST
    h = jnp.einsum("oc,nchw->nohw", w1, x_nchw, precision=prec)
    h = h + b1[None, :, None, None]
    h = jax.nn.gelu(h, approximate=False)
    y = jnp.einsum("oc,nchw->nohw", w2, h, precision=prec)
    return y + b2[None, :, None, None]


if __name__ == "__main__":
    key = jax.random.PRNGKey(0)
    k_x, k_w1, k_b1, k_w2, k_b2 = jax.random.split(key, 5)

    # Mlp(in_features=4, hidden_features=32, out_features=4), drop=0.0
    N, Cin, H, W = 2, 4, 16, 16
    Ch, Cout = 32, 4

    x = jax.random.normal(k_x, (N, Cin, H, W), dtype=jnp.float32)

    # Deterministic synthetic parameters, PyTorch nn.Linear layout (out, in).
    w1 = jax.random.normal(k_w1, (Ch, Cin), dtype=jnp.float32) * (1.0 / Cin ** 0.5)
    b1 = jax.random.normal(k_b1, (Ch,), dtype=jnp.float32) * 0.01
    w2 = jax.random.normal(k_w2, (Cout, Ch), dtype=jnp.float32) * (1.0 / Ch ** 0.5)
    b2 = jax.random.normal(k_b2, (Cout,), dtype=jnp.float32) * 0.01

    out = jax.block_until_ready(mlp_forward(x, w1, b1, w2, b2))
    ref = _reference(x, w1, b1, w2, b2)

    assert out.shape == (N, Cout, H, W)
    assert out.dtype == x.dtype
    # Both sides use f32 HIGHEST matmuls; the only deliberate difference is the
    # in-kernel erf polynomial (|err| <= 1.5e-7), well inside this tolerance.
    assert jnp.allclose(out, ref, atol=2e-5, rtol=2e-5), float(
        jnp.max(jnp.abs(out - ref)))

    print("KERNEL_OK")
</pallas_src>

<mosaic_0001>
module attributes {stable_mosaic.version = 11 : i64} {
  func.func @_mlp_kernel(%arg0: i32, %arg1: i32, %arg2: memref<1x4x256xf32, #tpu.memory_space<vmem>>, %arg3: memref<32x4xf32, #tpu.memory_space<vmem>>, %arg4: memref<32x1xf32, #tpu.memory_space<vmem>>, %arg5: memref<4x32xf32, #tpu.memory_space<vmem>>, %arg6: memref<4x1xf32, #tpu.memory_space<vmem>>, %arg7: memref<1x4x256xf32, #tpu.memory_space<vmem>>) attributes {dimension_semantics = [#tpu.dimension_semantics<parallel>, #tpu.dimension_semantics<parallel>], iteration_bounds = array<i64: 2, 1>, scalar_prefetch = 0 : i64, scratch_operands = 0 : i64, tpu.core_type = #tpu.core_type<tc>, window_params = [{transform_indices = @transform_0, window_bounds = array<i64: 1, 4, 256>}, {pipeline_mode = #tpu.pipeline_mode<synchronous>, transform_indices = @transform_1, window_bounds = array<i64: 32, 4>}, {pipeline_mode = #tpu.pipeline_mode<synchronous>, transform_indices = @transform_2, window_bounds = array<i64: 32, 1>}, {pipeline_mode = #tpu.pipeline_mode<synchronous>, transform_indices = @transform_3, window_bounds = array<i64: 4, 32>}, {pipeline_mode = #tpu.pipeline_mode<synchronous>, transform_indices = @transform_4, window_bounds = array<i64: 4, 1>}, {transform_indices = @transform_5, window_bounds = array<i64: 1, 4, 256>}]} {
    %c0 = arith.constant 0 : index
    %c0_0 = arith.constant 0 : index
    %0 = vector.load %arg3[%c0, %c0_0] : memref<32x4xf32, #tpu.memory_space<vmem>>, vector<32x4xf32>
    %c0_1 = arith.constant 0 : index
    %c0_2 = arith.constant 0 : index
    %1 = vector.load %arg4[%c0_1, %c0_2] : memref<32x1xf32, #tpu.memory_space<vmem>>, vector<32x1xf32>
    %c0_3 = arith.constant 0 : index
    %c0_4 = arith.constant 0 : index
    %2 = vector.load %arg5[%c0_3, %c0_4] : memref<4x32xf32, #tpu.memory_space<vmem>>, vector<4x32xf32>
    %c0_5 = arith.constant 0 : index
    %c0_6 = arith.constant 0 : index
    %3 = vector.load %arg6[%c0_5, %c0_6] : memref<4x1xf32, #tpu.memory_space<vmem>>, vector<4x1xf32>
    %c0_7 = arith.constant 0 : index
    %c0_8 = arith.constant 0 : index
    %c0_9 = arith.constant 0 : index
    %4 = vector.load %arg2[%c0_7, %c0_8, %c0_9] : memref<1x4x256xf32, #tpu.memory_space<vmem>>, vector<1x4x256xf32>
    %5 = vector.shape_cast %4 : vector<1x4x256xf32> to vector<4x256xf32>
    %cst = arith.constant dense<0.000000e+00> : vector<32x256xf32>
    %6 = tpu.matmul %0, %5, %cst {dimension_numbers = #tpu.dot_dimension_numbers<[1], [0], [0], [1], [0, 0, 1, 1], [], []>, precision = #tpu.contract_precision<fp32>} : vector<32x4xf32>, vector<4x256xf32>, vector<32x256xf32> -> vector<32x256xf32>
    %7 = vector.broadcast %1 : vector<32x1xf32> to vector<32x256xf32>
    %8 = arith.addf %6, %7 : vector<32x256xf32>
    %cst_10 = arith.constant 5.000000e-01 : f32
    %9 = vector.broadcast %cst_10 : f32 to vector<32x256xf32>
    %10 = arith.mulf %9, %8 : vector<32x256xf32>
    %cst_11 = arith.constant 0.707106769 : f32
    %11 = vector.broadcast %cst_11 : f32 to vector<32x256xf32>
    %12 = arith.mulf %8, %11 : vector<32x256xf32>
    %13 = math.absf %12 : vector<32x256xf32>
    %cst_12 = arith.constant 0.327591091 : f32
    %14 = vector.broadcast %cst_12 : f32 to vector<32x256xf32>
    %15 = arith.mulf %14, %13 : vector<32x256xf32>
    %cst_13 = arith.constant 1.000000e+00 : f32
    %16 = vector.broadcast %cst_13 : f32 to vector<32x256xf32>
    %17 = arith.addf %16, %15 : vector<32x256xf32>
    %cst_14 = arith.constant 1.000000e+00 : f32
    %18 = vector.broadcast %cst_14 : f32 to vector<32x256xf32>
    %19 = arith.divf %18, %17 : vector<32x256xf32>
    %cst_15 = arith.constant 1.06140542 : f32
    %20 = vector.broadcast %cst_15 : f32 to vector<32x256xf32>
    %21 = arith.mulf %20, %19 : vector<32x256xf32>
    %cst_16 = arith.constant -1.45315206 : f32
    %22 = vector.broadcast %cst_16 : f32 to vector<32x256xf32>
    %23 = arith.addf %21, %22 : vector<32x256xf32>
    %24 = arith.mulf %23, %19 : vector<32x256xf32>
    %cst_17 = arith.constant 1.42141378 : f32
    %25 = vector.broadcast %cst_17 : f32 to vector<32x256xf32>
    %26 = arith.addf %24, %25 : vector<32x256xf32>
    %27 = arith.mulf %26, %19 : vector<32x256xf32>
    %cst_18 = arith.constant -0.284496725 : f32
    %28 = vector.broadcast %cst_18 : f32 to vector<32x256xf32>
    %29 = arith.addf %27, %28 : vector<32x256xf32>
    %30 = arith.mulf %29, %19 : vector<32x256xf32>
    %cst_19 = arith.constant 0.254829586 : f32
    %31 = vector.broadcast %cst_19 : f32 to vector<32x256xf32>
    %32 = arith.addf %30, %31 : vector<32x256xf32>
    %33 = arith.mulf %32, %19 : vector<32x256xf32>
    %34 = arith.mulf %13, %13 : vector<32x256xf32>
    %cst_20 = arith.constant 0.000000e+00 : f32
    %35 = vector.broadcast %cst_20 : f32 to vector<32x256xf32>
    %36 = arith.subf %35, %34 : vector<32x256xf32>
    %37 = math.exp %36 : vector<32x256xf32>
    %38 = arith.mulf %33, %37 : vector<32x256xf32>
    %cst_21 = arith.constant 1.000000e+00 : f32
    %39 = vector.broadcast %cst_21 : f32 to vector<32x256xf32>
    %40 = arith.subf %39, %38 : vector<32x256xf32>
    %cst_22 = arith.constant 0.000000e+00 : f32
    %41 = vector.broadcast %cst_22 : f32 to vector<32x256xf32>
    %42 = arith.cmpf olt, %12, %41 : vector<32x256xf32>
    %cst_23 = arith.constant 0.000000e+00 : f32
    %43 = vector.broadcast %cst_23 : f32 to vector<32x256xf32>
    %44 = arith.subf %43, %40 : vector<32x256xf32>
    %45 = arith.select %42, %44, %40 : vector<32x256xi1>, vector<32x256xf32>
    %cst_24 = arith.constant 1.000000e+00 : f32
    %46 = vector.broadcast %cst_24 : f32 to vector<32x256xf32>
    %47 = arith.addf %46, %45 : vector<32x256xf32>
    %48 = arith.mulf %10, %47 : vector<32x256xf32>
    %cst_25 = arith.constant dense<0.000000e+00> : vector<4x256xf32>
    %49 = tpu.matmul %2, %48, %cst_25 {dimension_numbers = #tpu.dot_dimension_numbers<[1], [0], [0], [1], [0, 0, 1, 1], [], []>, precision = #tpu.contract_precision<fp32>} : vector<4x32xf32>, vector<32x256xf32>, vector<4x256xf32> -> vector<4x256xf32>
    %50 = vector.broadcast %3 : vector<4x1xf32> to vector<4x256xf32>
    %51 = arith.addf %49, %50 : vector<4x256xf32>
    %c0_26 = arith.constant 0 : index
    %c0_27 = arith.constant 0 : index
    %c0_28 = arith.constant 0 : index
    %52 = vector.load %arg7[%c0_26, %c0_27, %c0_28] : memref<1x4x256xf32, #tpu.memory_space<vmem>>, vector<1x4x256xf32>
    %53 = vector.shape_cast %52 : vector<1x4x256xf32> to vector<4x256xf32>
    %54 = vector.shape_cast %51 : vector<4x256xf32> to vector<1x4x256xf32>
    tpu.vector_store %arg7[%c0_26, %c0_27, %c0_28], %54 {strides = array<i32>} : memref<1x4x256xf32, #tpu.memory_space<vmem>>, vector<1x4x256xf32>,
    return
  }
  func.func @transform_0(%arg0: i32, %arg1: i32) -> (i32, i32, i32) {
    %c0_i32 = arith.constant 0 : i32
    %c0_i32_0 = arith.constant 0 : i32
    return %arg0, %c0_i32, %arg1 : i32, i32, i32
  }
  func.func @transform_1(%arg0: i32, %arg1: i32) -> (i32, i32) {
    %c0_i32 = arith.constant 0 : i32
    %c0_i32_0 = arith.constant 0 : i32
    %c0_i32_1 = arith.constant 0 : i32
    return %c0_i32, %c0_i32_0 : i32, i32
  }
  func.func @transform_2(%arg0: i32, %arg1: i32) -> (i32, i32) {
    %c0_i32 = arith.constant 0 : i32
    %c0_i32_0 = arith.constant 0 : i32
    %c0_i32_1 = arith.constant 0 : i32
    return %c0_i32, %c0_i32_0 : i32, i32
  }
  func.func @transform_3(%arg0: i32, %arg1: i32) -> (i32, i32) {
    %c0_i32 = arith.constant 0 : i32
    %c0_i32_0 = arith.constant 0 : i32
    %c0_i32_1 = arith.constant 0 : i32
    return %c0_i32, %c0_i32_0 : i32, i32
  }
  func.func @transform_4(%arg0: i32, %arg1: i32) -> (i32, i32) {
    %c0_i32 = arith.constant 0 : i32
    %c0_i32_0 = arith.constant 0 : i32
    %c0_i32_1 = arith.constant 0 : i32
    return %c0_i32, %c0_i32_0 : i32, i32
  }
  func.func @transform_5(%arg0: i32, %arg1: i32) -> (i32, i32, i32) {
    %c0_i32 = arith.constant 0 : i32
    %c0_i32_0 = arith.constant 0 : i32
    return %arg0, %c0_i32, %arg1 : i32, i32, i32
  }
}

</mosaic_0001>

<llo_original>
// kernel: tpu_custom_call.1
$region0: #{tpu_custom_call.1}
  #allocation0 [shape = 'u32[]', space=smem, size = 0x4, offset = 0x4, fixed_abs, tag = 'smem constant byte address 0x4 - core index']
  #allocation1 [shape = 'u32[72,128]{1,0:T(1,128)}', space=vmem, size = 0x9000, scoped, tag = 'internal scratch']
  %s0 = inlined_call_operand.vmem [shape: f32[2,4,256], index: 0, kind: input, shape index: {}]
  %s1 = inlined_call_operand.vmem [shape: f32[32,4], index: 1, kind: input, shape index: {}]
  %s2 = inlined_call_operand.vmem [shape: f32[32,1], index: 2, kind: input, shape index: {}]
  %s3 = inlined_call_operand.vmem [shape: f32[4,32], index: 3, kind: input, shape index: {}]
  %s4 = inlined_call_operand.vmem [shape: f32[4,1], index: 4, kind: input, shape index: {}]
  %s5 = inlined_call_operand.hbm [shape: f32[2,4,256], index: 5, kind: output, shape index: {}]
  %s6 = sld [smem:[#allocation0]]
  $region53: #{tpu_custom_call.1} parent=0
    _
  %s8 = ssub.s32 1, %s6
  %s9 = scalar_select 0, %s8, %s6
  $region1: #{tpu_custom_call.1} parent=0
    #allocation2 [shape = 'u8[8192]{0}', space=vmem, size = 0x2000, scoped, tag = 'output window, operand 0']
    #allocation3 [shape = 's32[2]{0}', space=sflag, size = 0x8, scoped, tag = 'scoped memory for tpu_custom_call.1']
    %10 = vsyncpa [#allocation3], 0
    %s11 = scalar_lea.sflag [#allocation3], 1
    %12 = vsyncpa %s11, 0
    loop: start=0, step=1, limit=4
    $region2: #{tpu_custom_call.1} parent=1 // loop_pre_header
      _
    $region3: #{tpu_custom_call.1} parent=1 // loop_header
      %s14 = sphi 0, %s18
      %p15 = scmp.ge.s32.totalorder %s14, 4
      %s21 = sphi 0, %s33
      %s22 = sphi 0, %s29
      %s23 = sphi 0, %s21
      %s24 = sphi 0, %s22
      %s25 = sphi 0, %s23
      %s26 = sphi 0, %s24
      %s38 = sphi 0, %s40
      %s41 = sphi 0, %s38
      %s42 = sphi 0, %s41
      %s58 = sphi 0, %s42
      %s62 = sphi 0, %s62
      %s64 = sphi 0, %s62
      %s65 = sphi 0, %s64
      %s79 = sphi 0, %s65
      %s83 = sphi 0, %s83
      %s85 = sphi 0, %s83
      %s86 = sphi 0, %s85
      %s100 = sphi 0, %s86
      %s104 = sphi 0, %s104
      %s106 = sphi 0, %s104
      %s107 = sphi 0, %s106
      %s121 = sphi 0, %s107
      %s125 = sphi 0, %s125
      %s127 = sphi 0, %s125
      %s128 = sphi 0, %s127
      %s142 = sphi 0, %s128
      %s150 = sphi 0, %s152
      %s153 = sphi 0, %s150
      %s154 = sphi 0, %s153
      %s170 = sphi 0, %s154
    $region4: #{tpu_custom_call.1} parent=1 // loop_header_branch
      %17 = sbr.rel (%p15) target = $region8
    $region5: #{tpu_custom_call.1} parent=1 // loop_body
      %s19 = ssub.s32 %s14, 1
      %s20 = ssub.s32 %s14, 2
      %s27 = sadd.s32 1, %s22
      %p28 = scmp.ge.s32.totalorder %s27, 1
      %s29 = scalar_select %p28, 0, %s27
      %s30 = sadd.s32 1, %s21
      %s31 = scalar_select %p28, %s30, %s21
      %p32 = scmp.ge.s32.totalorder %s31, 2
      %s33 = scalar_select %p32, 0, %s31
      %s34 = ssub.s32 %s21, %s33
      %s35 = ssub.s32 %s22, %s29
      %s36 = sor.u32 %s34, %s35
      %p37 = scmp.eq.s32.totalorder %s36, 0
      %s39 = sadd.s32 %s38, 1
      %s40 = scalar_select %p37, %s38, %s39
      %p43 = pneg %p37
      %p44 = scmp.eq.s32.totalorder %s14, 1
      %p45 = por %p43, %p44
      %p46 = scmp.ne.s32.totalorder %s38, %s41
      %p47 = scmp.eq.s32.totalorder %s14, 0
      %p48 = por %p46, %p47
      %p49 = scmp.ne.s32.totalorder %s38, %s41
      %p50 = scmp.eq.s32.totalorder %s19, 1
      %p51 = por %p49, %p50
      %p52 = scmp.ne.s32.totalorder %s41, %s42
      %p53 = scmp.eq.s32.totalorder %s19, 0
      %p54 = por %p52, %p53
      %p55 = scmp.ne.s32.totalorder %s41, %s42
      %p56 = scmp.eq.s32.totalorder %s20, 1
      %p57 = por %p55, %p56
      %p59 = scmp.ne.s32.totalorder %s42, %s58
      %p60 = scmp.eq.s32.totalorder %s20, 0
      %p61 = por %p59, %p60
      %s63 = sadd.s32 %s62, 1
      %p66 = scmp.eq.s32.totalorder %s14, 1
      %p67 = scmp.ne.s32.totalorder %s62, %s64
      %p68 = scmp.eq.s32.totalorder %s14, 0
      %p69 = por %p67, %p68
      %p70 = scmp.ne.s32.totalorder %s62, %s64
      %p71 = scmp.eq.s32.totalorder %s19, 1
      %p72 = por %p70, %p71
      %p73 = scmp.ne.s32.totalorder %s64, %s65
      %p74 = scmp.eq.s32.totalorder %s19, 0
      %p75 = por %p73, %p74
      %p76 = scmp.ne.s32.totalorder %s64, %s65
      %p77 = scmp.eq.s32.totalorder %s20, 1
      %p78 = por %p76, %p77
      %p80 = scmp.ne.s32.totalorder %s65, %s79
      %p81 = scmp.eq.s32.totalorder %s20, 0
      %p82 = por %p80, %p81
      %s84 = sadd.s32 %s83, 1
      %p87 = scmp.eq.s32.totalorder %s14, 1
      %p88 = scmp.ne.s32.totalorder %s83, %s85
      %p89 = scmp.eq.s32.totalorder %s14, 0
      %p90 = por %p88, %p89
      %p91 = scmp.ne.s32.totalorder %s83, %s85
      %p92 = scmp.eq.s32.totalorder %s19, 1
      %p93 = por %p91, %p92
      %p94 = scmp.ne.s32.totalorder %s85, %s86
      %p95 = scmp.eq.s32.totalorder %s19, 0
      %p96 = por %p94, %p95
      %p97 = scmp.ne.s32.totalorder %s85, %s86
      %p98 = scmp.eq.s32.totalorder %s20, 1
      %p99 = por %p97, %p98
      %p101 = scmp.ne.s32.totalorder %s86, %s100
      %p102 = scmp.eq.s32.totalorder %s20, 0
      %p103 = por %p101, %p102
      %s105 = sadd.s32 %s104, 1
      %p108 = scmp.eq.s32.totalorder %s14, 1
      %p109 = scmp.ne.s32.totalorder %s104, %s106
      %p110 = scmp.eq.s32.totalorder %s14, 0
      %p111 = por %p109, %p110
      %p112 = scmp.ne.s32.totalorder %s104, %s106
      %p113 = scmp.eq.s32.totalorder %s19, 1
      %p114 = por %p112, %p113
      %p115 = scmp.ne.s32.totalorder %s106, %s107
      %p116 = scmp.eq.s32.totalorder %s19, 0
      %p117 = por %p115, %p116
      %p118 = scmp.ne.s32.totalorder %s106, %s107
      %p119 = scmp.eq.s32.totalorder %s20, 1
      %p120 = por %p118, %p119
      %p122 = scmp.ne.s32.totalorder %s107, %s121
      %p123 = scmp.eq.s32.totalorder %s20, 0
      %p124 = por %p122, %p123
      %s126 = sadd.s32 %s125, 1
      %p129 = scmp.eq.s32.totalorder %s14, 1
      %p130 = scmp.ne.s32.totalorder %s125, %s127
      %p131 = scmp.eq.s32.totalorder %s14, 0
      %p132 = por %p130, %p131
      %p133 = scmp.ne.s32.totalorder %s125, %s127
      %p134 = scmp.eq.s32.totalorder %s19, 1
      %p135 = por %p133, %p134
      %p136 = scmp.ne.s32.totalorder %s127, %s128
      %p137 = scmp.eq.s32.totalorder %s19, 0
      %p138 = por %p136, %p137
      %p139 = scmp.ne.s32.totalorder %s127, %s128
      %p140 = scmp.eq.s32.totalorder %s20, 1
      %p141 = por %p139, %p140
      %p143 = scmp.ne.s32.totalorder %s128, %s142
      %p144 = scmp.eq.s32.totalorder %s20, 0
      %p145 = por %p143, %p144
      %s146 = ssub.s32 %s21, %s33
      %s147 = ssub.s32 %s22, %s29
      %s148 = sor.u32 %s146, %s147
      %p149 = scmp.eq.s32.totalorder %s148, 0
      %s151 = sadd.s32 %s150, 1
      %s152 = scalar_select %p149, %s150, %s151
      %p155 = pneg %p149
      %p156 = scmp.eq.s32.totalorder %s14, 1
      %p157 = por %p155, %p156
      %p158 = scmp.ne.s32.totalorder %s150, %s153
      %p159 = scmp.eq.s32.totalorder %s14, 0
      %p160 = por %p158, %p159
      %p161 = scmp.ne.s32.totalorder %s150, %s153
      %p162 = scmp.eq.s32.totalorder %s19, 1
      %p163 = por %p161, %p162
      %p164 = scmp.ne.s32.totalorder %s153, %s154
      %p165 = scmp.eq.s32.totalorder %s19, 0
      %p166 = por %p164, %p165
      %p167 = scmp.ne.s32.totalorder %s153, %s154
      %p168 = scmp.eq.s32.totalorder %s20, 1
      %p169 = por %p167, %p168
      %p171 = scmp.ne.s32.totalorder %s154, %s170
      %p172 = scmp.eq.s32.totalorder %s20, 0
      %p173 = por %p171, %p172
      %p174 = scmp.le.s32.totalorder 1, %s14
      %p175 = scmp.lt.s32.totalorder %s14, 3
      %p176 = pnand %p174, %p175
      %p177 = pneg %p176
      // Predicated region
      $region9: #{tpu_custom_call.1} parent=5 // pred_check
        _
      $region10: #{tpu_custom_call.1} parent=5 // pred_check_branch
        %179 = sbr.rel (%p176) target = $region12
      $region11: #{tpu_custom_call.1} parent=5 // pred_region
        %s180 = ssub.s32 %s14, 1
        // Predicated region
        $region13: #{tpu_custom_call.1} parent=11 // pred_check
          %p181 = pneg %p75
        $region14: #{tpu_custom_call.1} parent=11 // pred_check_branch
          %183 = sbr.rel (%p181) target = $region16
        $region15: #{tpu_custom_call.1} parent=11 // pred_region
          _
        $region16: #{tpu_custom_call.1} parent=11 // pred_fallthru
          _
        // Predicated region
        $region17: #{tpu_custom_call.1} parent=11 // pred_check
          %p184 = pneg %p96
        $region18: #{tpu_custom_call.1} parent=11 // pred_check_branch
          %186 = sbr.rel (%p184) target = $region20
        $region19: #{tpu_custom_call.1} parent=11 // pred_region
          _
        $region20: #{tpu_custom_call.1} parent=11 // pred_fallthru
          _
        // Predicated region
        $region21: #{tpu_custom_call.1} parent=11 // pred_check
          %p187 = pneg %p117
        $region22: #{tpu_custom_call.1} parent=11 // pred_check_branch
          %189 = sbr.rel (%p187) target = $region24
        $region23: #{tpu_custom_call.1} parent=11 // pred_region
          _
        $region24: #{tpu_custom_call.1} parent=11 // pred_fallthru
          _
        // Predicated region
        $region25: #{tpu_custom_call.1} parent=11 // pred_check
          %p190 = pneg %p138
        $region26: #{tpu_custom_call.1} parent=11 // pred_check_branch
          %192 = sbr.rel (%p190) target = $region28
        $region27: #{tpu_custom_call.1} parent=11 // pred_region
          _
        $region28: #{tpu_custom_call.1} parent=11 // pred_fallthru
          _
      $region12: #{tpu_custom_call.1} parent=5 // pred_fallthru
        _
      %p193 = scmp.lt.s32.totalorder %s14, 2
      // Predicated region
      $region29: #{tpu_custom_call.1} parent=5 // pred_check
        %p194 = pneg %p193
      $region30: #{tpu_custom_call.1} parent=5 // pred_check_branch
        %196 = sbr.rel (%p194) target = $region32
      $region31: #{tpu_custom_call.1} parent=5 // pred_region
        // Predicated region
        $region33: #{tpu_custom_call.1} parent=31 // pred_check
          %p197 = pneg %p48
        $region34: #{tpu_custom_call.1} parent=31 // pred_check_branch
          %199 = sbr.rel (%p197) target = $region36
        $region35: #{tpu_custom_call.1} parent=31 // pred_region
          %s200 = smul.u32 2, %s22
          %p201 = scmp.lt.s32.totalorder %s21, 1
          %s202 = scalar_select %p201, %s21, 1
          %p203 = scmp.lt.s32.totalorder %s200, 1
          %s204 = scalar_select %p203, %s200, 1
          %s205 = smul.addr %s202, 2
          %s206 = sadd.s32 %s204, %s205
          %s207 = smul.addr %s206, 4
          %s208 = scalar_lea.vmem %s0, %s207
          %s209 = smul.u32 2, %s22
        $region36: #{tpu_custom_call.1} parent=31 // pred_fallthru
          _
      $region32: #{tpu_custom_call.1} parent=5 // pred_fallthru
        _
      %p210 = scmp.le.s32.totalorder 1, %s14
      %p211 = scmp.lt.s32.totalorder %s14, 3
      %p212 = pnand %p210, %p211
      %p213 = pneg %p212
      // Predicated region
      $region37: #{tpu_custom_call.1} parent=5 // pred_check
        _
      $region38: #{tpu_custom_call.1} parent=5 // pred_check_branch
        %215 = sbr.rel (%p212) target = $region40
      $region39: #{tpu_custom_call.1} parent=5 // pred_region
        %s216 = ssub.s32 %s14, 1
        %s217 = smul.u32 2, %s24
        %p218 = scmp.lt.s32.totalorder %s23, 1
        %s219 = scalar_select %p218, %s23, 1
        %p220 = scmp.lt.s32.totalorder %s217, 1
        %s221 = scalar_select %p220, %s217, 1
        %s222 = smul.addr %s219, 2
        %s223 = sadd.s32 %s221, %s222
        %s224 = smul.addr %s223, 4
        %s225 = scalar_lea.vmem %s0, %s224
        %p226 = pneg %p54
        %p227 = pneg %p51
        %p228 = pneg %p75
        %p229 = pneg %p72
        %p230 = pneg %p96
        %p231 = pneg %p93
        %p232 = pneg %p117
        %p233 = pneg %p114
        %p234 = pneg %p138
        %p235 = pneg %p135
        %p236 = pneg %p166
        %p237 = pneg %p163
        %s238 = sand.u32 %s153, 1
        %s239 = scalar_lea.sflag [#allocation3], %s238
        %s240 = sand.u32 %s153, 1
        %s241 = smul.addr %s240, 8
        %s242 = scalar_lea.vmem [#allocation2], %s241
        %s243 = smul.u32 2, %s24
        %p244 = scmp.lt.s32.totalorder %s23, 1
        %s245 = scalar_select %p244, %s23, 1
        %p246 = scmp.lt.s32.totalorder %s243, 1
        %s247 = scalar_select %p246, %s243, 1
        %s248 = smul.addr %s245, 2
        %s249 = sadd.s32 %s247, %s248
        %s250 = smul.addr %s249, 4
        %s251 = scalar_lea.vmem %s0, %s250
        %s252 = smul.u32 2, %s24
        %s253 = smul.u32 2, %s24
        %v254 = vld [vmem:[%s1] sm:$0xff]
        %v255 = vld [vmem:[%s1 + $0x8] sm:$0xff]
        %v256 = vld [vmem:[%s1 + $0x10] sm:$0xff]
        %v257 = vld [vmem:[%s1 + $0x18] sm:$0xff]
        %v258 = vld [vmem:[%s2] sm:$0xff]
        %v259 = vld [vmem:[%s2 + $0x8] sm:$0xff]
        %v260 = vld [vmem:[%s2 + $0x10] sm:$0xff]
        %v261 = vld [vmem:[%s2 + $0x18] sm:$0xff]
        %v262 = vld [vmem:[%s3] sm:$0xf]
        %v263 = vld [vmem:[%s4] sm:$0xf]
        %v264 = vld [vmem:[%s251] sm:$0xff]
        %266 = vset.pattern.permute.xlu0 0
        %267 = vperm.xlu0 %266, %v258
        %v268 = vpop.permute.xlu0 %267
        %271 = vset.pattern.permute.xlu0 0
        %272 = vperm.xlu0 %271, %v259
        %v273 = vpop.permute.xlu0 %272
        %276 = vset.pattern.permute.xlu0 0
        %277 = vperm.xlu0 %276, %v260
        %v278 = vpop.permute.xlu0 %277
        %281 = vset.pattern.permute.xlu0 0
        %282 = vperm.xlu0 %281, %v261
        %v283 = vpop.permute.xlu0 %282
        %286 = vst [vmem:[#allocation1] ss:$2 sm:$0xff] %v264
        %v287 = vld.sshfl [vmem:[#allocation1] sm:$0xff pattern:$0x75316420]
        %v288 = vld.sshfl [vmem:[#allocation1 + $0x8] sm:$0xff pattern:$0x75316420]
        %vm289 = vcmask 31744
        %v291 = vsel %vm289, %v254, 0
        %v294 = vsel %vm289, %v255, 0
        %v297 = vsel %vm289, %v256, 0
        %v300 = vsel %vm289, %v257, 0
        %vm302 = vcmask 1043456
        %v303 = vsel %vm302, %v287, 0
        %v305 = vsel %vm302, %v288, 0
        %307 = vmatpush.msra.mxu0 0.0
        %308 = vmatpush.msra.mxu0 0.0
        %309 = vmatpush.msra.mxu0 0.0
        %310 = vmatpush.msra.mxu0 0.0
        %311 = vmatpush.msra.mxu0 0.0
        %312 = vmatpush.msra.mxu0 0.0
        %313 = vmatpush.msra.mxu0 0.0
        %314 = vmatpush.msra.mxu0 0.0
        %315 = vmatpush.msra.mxu0 0.0
        %316 = vmatpush.msra.mxu0 0.0
        %317 = vmatpush.msra.mxu0 0.0
        %318 = vmatpush.msra.mxu0 0.0
        %319 = vmatpush.msra.mxu0 0.0
        %320 = vmatpush.msra.mxu0 0.0
        %321 = vmatpush.msra.mxu0 0.0
        %v322 = vand.u32 %v303, 4294901760
        %323 = vmatpush.msra.mxu0 %v322
        %v324 = vand.u32 %v291, 4294901760
        %v325 = vsub.f32 %v291, %v324
        %v326 = vand.u32 %v325, 4294901760
        %v327 = vsub.f32 %v325, %v326
        %v328 = vand.u32 %v327, 4294901760
        %329 = vmatmul.f32.gmra.mxu0 %v328
        %v330 = vpop.f32.mrf.mxu0
        %v331 = vadd.f32 %v268, %v330
        %v332 = vand.u32 %v294, 4294901760
        %v333 = vsub.f32 %v294, %v332
        %v334 = vand.u32 %v333, 4294901760
        %v335 = vsub.f32 %v333, %v334
        %v336 = vand.u32 %v335, 4294901760
        %337 = vmatmul.f32.gmra.mxu0 %v336
        %v338 = vpop.f32.mrf.mxu0
        %v339 = vadd.f32 %v273, %v338
        %v340 = vand.u32 %v297, 4294901760
        %v341 = vsub.f32 %v297, %v340
        %v342 = vand.u32 %v341, 4294901760
        %v343 = vsub.f32 %v341, %v342
        %v344 = vand.u32 %v343, 4294901760
        %345 = vmatmul.f32.gmra.mxu0 %v344
        %v346 = vpop.f32.mrf.mxu0
        %v347 = vadd.f32 %v278, %v346
        %v348 = vand.u32 %v300, 4294901760
        %v349 = vsub.f32 %v300, %v348
        %v350 = vand.u32 %v349, 4294901760
        %v351 = vsub.f32 %v349, %v350
        %v352 = vand.u32 %v351, 4294901760
        %353 = vmatmul.f32.gmra.mxu0 %v352
        %v354 = vpop.f32.mrf.mxu0
        %v355 = vadd.f32 %v283, %v354
        %356 = vdwg.mxu0
        %357 = vmatpush.msra.mxu0 0.0
        %358 = vmatpush.msra.mxu0 0.0
        %359 = vmatpush.msra.mxu0 0.0
        %360 = vmatpush.msra.mxu0 0.0
        %361 = vmatpush.msra.mxu0 0.0
        %362 = vmatpush.msra.mxu0 0.0
        %363 = vmatpush.msra.mxu0 0.0
        %364 = vmatpush.msra.mxu0 0.0
        %365 = vmatpush.msra.mxu0 0.0
        %366 = vmatpush.msra.mxu0 0.0
        %367 = vmatpush.msra.mxu0 0.0
        %368 = vmatpush.msra.mxu0 0.0
        %369 = vmatpush.msra.mxu0 0.0
        %370 = vmatpush.msra.mxu0 0.0
        %371 = vmatpush.msra.mxu0 0.0
        %v372 = vand.u32 %v303, 4294901760
        %v373 = vsub.f32 %v303, %v372
        %v374 = vand.u32 %v373, 4294901760
        %v375 = vsub.f32 %v373, %v374
        %v376 = vand.u32 %v375, 4294901760
        %377 = vmatpush.msra.mxu0 %v376
        %v378 = vand.u32 %v291, 4294901760
        %379 = vmatmul.f32.gmra.mxu0 %v378
        %v380 = vpop.f32.mrf.mxu0
        %v381 = vadd.f32 %v331, %v380
        %v382 = vand.u32 %v294, 4294901760
        %383 = vmatmul.f32.gmra.mxu0 %v382
        %v384 = vpop.f32.mrf.mxu0
        %v385 = vadd.f32 %v339, %v384
        %v386 = vand.u32 %v297, 4294901760
        %387 = vmatmul.f32.gmra.mxu0 %v386
        %v388 = vpop.f32.mrf.mxu0
        %v389 = vadd.f32 %v347, %v388
        %v390 = vand.u32 %v300, 4294901760
        %391 = vmatmul.f32.gmra.mxu0 %v390
        %v392 = vpop.f32.mrf.mxu0
        %v393 = vadd.f32 %v355, %v392
        %394 = vdwg.mxu0
        %395 = vmatpush.msra.mxu0 0.0
        %396 = vmatpush.msra.mxu0 0.0
        %397 = vmatpush.msra.mxu0 0.0
        %398 = vmatpush.msra.mxu0 0.0
        %399 = vmatpush.msra.mxu0 0.0
        %400 = vmatpush.msra.mxu0 0.0
        %401 = vmatpush.msra.mxu0 0.0
        %402 = vmatpush.msra.mxu0 0.0
        %403 = vmatpush.msra.mxu0 0.0
        %404 = vmatpush.msra.mxu0 0.0
        %405 = vmatpush.msra.mxu0 0.0
        %406 = vmatpush.msra.mxu0 0.0
        %407 = vmatpush.msra.mxu0 0.0
        %408 = vmatpush.msra.mxu0 0.0
        %409 = vmatpush.msra.mxu0 0.0
        %v410 = vand.u32 %v303, 4294901760
        %v411 = vsub.f32 %v303, %v410
        %412 = vmatpush.msra.mxu0 %v411
        %v413 = vand.u32 %v291, 4294901760
        %v414 = vsub.f32 %v291, %v413
        %415 = vmatmul.f32.gmra.mxu0 %v414
        %v416 = vpop.f32.mrf.mxu0
        %v417 = vadd.f32 %v381, %v416
        %v418 = vand.u32 %v294, 4294901760
        %v419 = vsub.f32 %v294, %v418
        %420 = vmatmul.f32.gmra.mxu0 %v419
        %v421 = vpop.f32.mrf.mxu0
        %v422 = vadd.f32 %v385, %v421
        %v423 = vand.u32 %v297, 4294901760
        %v424 = vsub.f32 %v297, %v423
        %425 = vmatmul.f32.gmra.mxu0 %v424
        %v426 = vpop.f32.mrf.mxu0
        %v427 = vadd.f32 %v389, %v426
        %v428 = vand.u32 %v300, 4294901760
        %v429 = vsub.f32 %v300, %v428
        %430 = vmatmul.f32.gmra.mxu0 %v429
        %v431 = vpop.f32.mrf.mxu0
        %v432 = vadd.f32 %v393, %v431
        %433 = vdwg.mxu0
        %434 = vmatpush.msra.mxu0 0.0
        %435 = vmatpush.msra.mxu0 0.0
        %436 = vmatpush.msra.mxu0 0.0
        %437 = vmatpush.msra.mxu0 0.0
        %438 = vmatpush.msra.mxu0 0.0
        %439 = vmatpush.msra.mxu0 0.0
        %440 = vmatpush.msra.mxu0 0.0
        %441 = vmatpush.msra.mxu0 0.0
        %442 = vmatpush.msra.mxu0 0.0
        %443 = vmatpush.msra.mxu0 0.0
        %444 = vmatpush.msra.mxu0 0.0
        %445 = vmatpush.msra.mxu0 0.0
        %446 = vmatpush.msra.mxu0 0.0
        %447 = vmatpush.msra.mxu0 0.0
        %448 = vmatpush.msra.mxu0 0.0
        %v449 = vand.u32 %v303, 4294901760
        %450 = vmatpush.msra.mxu0 %v449
        %v451 = vand.u32 %v291, 4294901760
        %v452 = vsub.f32 %v291, %v451
        %v453 = vand.u32 %v452, 4294901760
        %454 = vmatmul.f32.gmra.mxu0 %v453
        %v455 = vpop.f32.mrf.mxu0
        %v456 = vadd.f32 %v417, %v455
        %v457 = vand.u32 %v294, 4294901760
        %v458 = vsub.f32 %v294, %v457
        %v459 = vand.u32 %v458, 4294901760
        %460 = vmatmul.f32.gmra.mxu0 %v459
        %v461 = vpop.f32.mrf.mxu0
        %v462 = vadd.f32 %v422, %v461
        %v463 = vand.u32 %v297, 4294901760
        %v464 = vsub.f32 %v297, %v463
        %v465 = vand.u32 %v464, 4294901760
        %466 = vmatmul.f32.gmra.mxu0 %v465
        %v467 = vpop.f32.mrf.mxu0
        %v468 = vadd.f32 %v427, %v467
        %v469 = vand.u32 %v300, 4294901760
        %v470 = vsub.f32 %v300, %v469
        %v471 = vand.u32 %v470, 4294901760
        %472 = vmatmul.f32.gmra.mxu0 %v471
        %v473 = vpop.f32.mrf.mxu0
        %v474 = vadd.f32 %v432, %v473
        %475 = vdwg.mxu0
        %476 = vmatpush.msra.mxu0 0.0
        %477 = vmatpush.msra.mxu0 0.0
        %478 = vmatpush.msra.mxu0 0.0
        %479 = vmatpush.msra.mxu0 0.0
        %480 = vmatpush.msra.mxu0 0.0
        %481 = vmatpush.msra.mxu0 0.0
        %482 = vmatpush.msra.mxu0 0.0
        %483 = vmatpush.msra.mxu0 0.0
        %484 = vmatpush.msra.mxu0 0.0
        %485 = vmatpush.msra.mxu0 0.0
        %486 = vmatpush.msra.mxu0 0.0
        %487 = vmatpush.msra.mxu0 0.0
        %488 = vmatpush.msra.mxu0 0.0
        %489 = vmatpush.msra.mxu0 0.0
        %490 = vmatpush.msra.mxu0 0.0
        %v491 = vand.u32 %v303, 4294901760
        %v492 = vsub.f32 %v303, %v491
        %v493 = vand.u32 %v492, 4294901760
        %494 = vmatpush.msra.mxu0 %v493
        %v495 = vand.u32 %v291, 4294901760
        %496 = vmatmul.f32.gmra.mxu0 %v495
        %v497 = vpop.f32.mrf.mxu0
        %v498 = vadd.f32 %v456, %v497
        %v499 = vand.u32 %v294, 4294901760
        %500 = vmatmul.f32.gmra.mxu0 %v499
        %v501 = vpop.f32.mrf.mxu0
        %v502 = vadd.f32 %v462, %v501
        %v503 = vand.u32 %v297, 4294901760
        %504 = vmatmul.f32.gmra.mxu0 %v503
        %v505 = vpop.f32.mrf.mxu0
        %v506 = vadd.f32 %v468, %v505
        %v507 = vand.u32 %v300, 4294901760
        %508 = vmatmul.f32.gmra.mxu0 %v507
        %v509 = vpop.f32.mrf.mxu0
        %v510 = vadd.f32 %v474, %v509
        %511 = vdwg.mxu0
        %512 = vmatpush.msra.mxu0 0.0
        %513 = vmatpush.msra.mxu0 0.0
        %514 = vmatpush.msra.mxu0 0.0
        %515 = vmatpush.msra.mxu0 0.0
        %516 = vmatpush.msra.mxu0 0.0
        %517 = vmatpush.msra.mxu0 0.0
        %518 = vmatpush.msra.mxu0 0.0
        %519 = vmatpush.msra.mxu0 0.0
        %520 = vmatpush.msra.mxu0 0.0
        %521 = vmatpush.msra.mxu0 0.0
        %522 = vmatpush.msra.mxu0 0.0
        %523 = vmatpush.msra.mxu0 0.0
        %524 = vmatpush.msra.mxu0 0.0
        %525 = vmatpush.msra.mxu0 0.0
        %526 = vmatpush.msra.mxu0 0.0
        %v527 = vand.u32 %v303, 4294901760
        %528 = vmatpush.msra.mxu0 %v527
        %v529 = vand.u32 %v291, 4294901760
        %530 = vmatmul.f32.gmra.mxu0 %v529
        %v531 = vpop.f32.mrf.mxu0
        %v532 = vadd.f32 %v498, %v531
        %v533 = vand.u32 %v294, 4294901760
        %534 = vmatmul.f32.gmra.mxu0 %v533
        %v535 = vpop.f32.mrf.mxu0
        %v536 = vadd.f32 %v502, %v535
        %v537 = vand.u32 %v297, 4294901760
        %538 = vmatmul.f32.gmra.mxu0 %v537
        %v539 = vpop.f32.mrf.mxu0
        %v540 = vadd.f32 %v506, %v539
        %v541 = vand.u32 %v300, 4294901760
        %542 = vmatmul.f32.gmra.mxu0 %v541
        %v543 = vpop.f32.mrf.mxu0
        %v544 = vadd.f32 %v510, %v543
        %545 = vdwg.mxu0
        %546 = vmatpush.msra.mxu0 0.0
        %547 = vmatpush.msra.mxu0 0.0
        %548 = vmatpush.msra.mxu0 0.0
        %549 = vmatpush.msra.mxu0 0.0
        %550 = vmatpush.msra.mxu0 0.0
        %551 = vmatpush.msra.mxu0 0.0
        %552 = vmatpush.msra.mxu0 0.0
        %553 = vmatpush.msra.mxu0 0.0
        %554 = vmatpush.msra.mxu0 0.0
        %555 = vmatpush.msra.mxu0 0.0
        %556 = vmatpush.msra.mxu0 0.0
        %557 = vmatpush.msra.mxu0 0.0
        %558 = vmatpush.msra.mxu0 0.0
        %559 = vmatpush.msra.mxu0 0.0
        %560 = vmatpush.msra.mxu0 0.0
        %v561 = vand.u32 %v305, 4294901760
        %562 = vmatpush.msra.mxu0 %v561
        %v563 = vand.u32 %v291, 4294901760
        %v564 = vsub.f32 %v291, %v563
        %v565 = vand.u32 %v564, 4294901760
        %v566 = vsub.f32 %v564, %v565
        %v567 = vand.u32 %v566, 4294901760
        %568 = vmatmul.f32.gmra.mxu0 %v567
        %v569 = vpop.f32.mrf.mxu0
        %v570 = vadd.f32 %v268, %v569
        %v571 = vand.u32 %v294, 4294901760
        %v572 = vsub.f32 %v294, %v571
        %v573 = vand.u32 %v572, 4294901760
        %v574 = vsub.f32 %v572, %v573
        %v575 = vand.u32 %v574, 4294901760
        %576 = vmatmul.f32.gmra.mxu0 %v575
        %v577 = vpop.f32.mrf.mxu0
        %v578 = vadd.f32 %v273, %v577
        %v579 = vand.u32 %v297, 4294901760
        %v580 = vsub.f32 %v297, %v579
        %v581 = vand.u32 %v580, 4294901760
        %v582 = vsub.f32 %v580, %v581
        %v583 = vand.u32 %v582, 4294901760
        %584 = vmatmul.f32.gmra.mxu0 %v583
        %v585 = vpop.f32.mrf.mxu0
        %v586 = vadd.f32 %v278, %v585
        %v587 = vand.u32 %v300, 4294901760
        %v588 = vsub.f32 %v300, %v587
        %v589 = vand.u32 %v588, 4294901760
        %v590 = vsub.f32 %v588, %v589
        %v591 = vand.u32 %v590, 4294901760
        %592 = vmatmul.f32.gmra.mxu0 %v591
        %v593 = vpop.f32.mrf.mxu0
        %v594 = vadd.f32 %v283, %v593
        %595 = vdwg.mxu0
        %596 = vmatpush.msra.mxu0 0.0
        %597 = vmatpush.msra.mxu0 0.0
        %598 = vmatpush.msra.mxu0 0.0
        %599 = vmatpush.msra.mxu0 0.0
        %600 = vmatpush.msra.mxu0 0.0
        %601 = vmatpush.msra.mxu0 0.0
        %602 = vmatpush.msra.mxu0 0.0
        %603 = vmatpush.msra.mxu0 0.0
        %604 = vmatpush.msra.mxu0 0.0
        %605 = vmatpush.msra.mxu0 0.0
        %606 = vmatpush.msra.mxu0 0.0
        %607 = vmatpush.msra.mxu0 0.0
        %608 = vmatpush.msra.mxu0 0.0
        %609 = vmatpush.msra.mxu0 0.0
        %610 = vmatpush.msra.mxu0 0.0
        %v611 = vand.u32 %v305, 4294901760
        %v612 = vsub.f32 %v305, %v611
        %v613 = vand.u32 %v612, 4294901760
        %v614 = vsub.f32 %v612, %v613
        %v615 = vand.u32 %v614, 4294901760
        %616 = vmatpush.msra.mxu0 %v615
        %v617 = vand.u32 %v291, 4294901760
        %618 = vmatmul.f32.gmra.mxu0 %v617
        %v619 = vpop.f32.mrf.mxu0
        %v620 = vadd.f32 %v570, %v619
        %v621 = vand.u32 %v294, 4294901760
        %622 = vmatmul.f32.gmra.mxu0 %v621
        %v623 = vpop.f32.mrf.mxu0
        %v624 = vadd.f32 %v578, %v623
        %v625 = vand.u32 %v297, 4294901760
        %626 = vmatmul.f32.gmra.mxu0 %v625
        %v627 = vpop.f32.mrf.mxu0
        %v628 = vadd.f32 %v586, %v627
        %v629 = vand.u32 %v300, 4294901760
        %630 = vmatmul.f32.gmra.mxu0 %v629
        %v631 = vpop.f32.mrf.mxu0
        %v632 = vadd.f32 %v594, %v631
        %633 = vdwg.mxu0
        %634 = vmatpush.msra.mxu0 0.0
        %635 = vmatpush.msra.mxu0 0.0
        %636 = vmatpush.msra.mxu0 0.0
        %637 = vmatpush.msra.mxu0 0.0
        %638 = vmatpush.msra.mxu0 0.0
        %639 = vmatpush.msra.mxu0 0.0
        %640 = vmatpush.msra.mxu0 0.0
        %641 = vmatpush.msra.mxu0 0.0
        %642 = vmatpush.msra.mxu0 0.0
        %643 = vmatpush.msra.mxu0 0.0
        %644 = vmatpush.msra.mxu0 0.0
        %645 = vmatpush.msra.mxu0 0.0
        %646 = vmatpush.msra.mxu0 0.0
        %647 = vmatpush.msra.mxu0 0.0
        %648 = vmatpush.msra.mxu0 0.0
        %v649 = vand.u32 %v305, 4294901760
        %v650 = vsub.f32 %v305, %v649
        %651 = vmatpush.msra.mxu0 %v650
        %v652 = vand.u32 %v291, 4294901760
        %v653 = vsub.f32 %v291, %v652
        %654 = vmatmul.f32.gmra.mxu0 %v653
        %v655 = vpop.f32.mrf.mxu0
        %v656 = vadd.f32 %v620, %v655
        %v657 = vand.u32 %v294, 4294901760
        %v658 = vsub.f32 %v294, %v657
        %659 = vmatmul.f32.gmra.mxu0 %v658
        %v660 = vpop.f32.mrf.mxu0
        %v661 = vadd.f32 %v624, %v660
        %v662 = vand.u32 %v297, 4294901760
        %v663 = vsub.f32 %v297, %v662
        %664 = vmatmul.f32.gmra.mxu0 %v663
        %v665 = vpop.f32.mrf.mxu0
        %v666 = vadd.f32 %v628, %v665
        %v667 = vand.u32 %v300, 4294901760
        %v668 = vsub.f32 %v300, %v667
        %669 = vmatmul.f32.gmra.mxu0 %v668
        %v670 = vpop.f32.mrf.mxu0
        %v671 = vadd.f32 %v632, %v670
        %672 = vdwg.mxu0
        %673 = vmatpush.msra.mxu0 0.0
        %674 = vmatpush.msra.mxu0 0.0
        %675 = vmatpush.msra.mxu0 0.0
        %676 = vmatpush.msra.mxu0 0.0
        %677 = vmatpush.msra.mxu0 0.0
        %678 = vmatpush.msra.mxu0 0.0
        %679 = vmatpush.msra.mxu0 0.0
        %680 = vmatpush.msra.mxu0 0.0
        %681 = vmatpush.msra.mxu0 0.0
        %682 = vmatpush.msra.mxu0 0.0
        %683 = vmatpush.msra.mxu0 0.0
        %684 = vmatpush.msra.mxu0 0.0
        %685 = vmatpush.msra.mxu0 0.0
        %686 = vmatpush.msra.mxu0 0.0
        %687 = vmatpush.msra.mxu0 0.0
        %v688 = vand.u32 %v305, 4294901760
        %689 = vmatpush.msra.mxu0 %v688
        %v690 = vand.u32 %v291, 4294901760
        %v691 = vsub.f32 %v291, %v690
        %v692 = vand.u32 %v691, 4294901760
        %693 = vmatmul.f32.gmra.mxu0 %v692
        %v694 = vpop.f32.mrf.mxu0
        %v695 = vadd.f32 %v656, %v694
        %v696 = vand.u32 %v294, 4294901760
        %v697 = vsub.f32 %v294, %v696
        %v698 = vand.u32 %v697, 4294901760
        %699 = vmatmul.f32.gmra.mxu0 %v698
        %v700 = vpop.f32.mrf.mxu0
        %v701 = vadd.f32 %v661, %v700
        %v702 = vand.u32 %v297, 4294901760
        %v703 = vsub.f32 %v297, %v702
        %v704 = vand.u32 %v703, 4294901760
        %705 = vmatmul.f32.gmra.mxu0 %v704
        %v706 = vpop.f32.mrf.mxu0
        %v707 = vadd.f32 %v666, %v706
        %v708 = vand.u32 %v300, 4294901760
        %v709 = vsub.f32 %v300, %v708
        %v710 = vand.u32 %v709, 4294901760
        %711 = vmatmul.f32.gmra.mxu0 %v710
        %v712 = vpop.f32.mrf.mxu0
        %v713 = vadd.f32 %v671, %v712
        %714 = vdwg.mxu0
        %715 = vmatpush.msra.mxu0 0.0
        %716 = vmatpush.msra.mxu0 0.0
        %717 = vmatpush.msra.mxu0 0.0
        %718 = vmatpush.msra.mxu0 0.0
        %719 = vmatpush.msra.mxu0 0.0
        %720 = vmatpush.msra.mxu0 0.0
        %721 = vmatpush.msra.mxu0 0.0
        %722 = vmatpush.msra.mxu0 0.0
        %723 = vmatpush.msra.mxu0 0.0
        %724 = vmatpush.msra.mxu0 0.0
        %725 = vmatpush.msra.mxu0 0.0
        %726 = vmatpush.msra.mxu0 0.0
        %727 = vmatpush.msra.mxu0 0.0
        %728 = vmatpush.msra.mxu0 0.0
        %729 = vmatpush.msra.mxu0 0.0
        %v730 = vand.u32 %v305, 4294901760
        %v731 = vsub.f32 %v305, %v730
        %v732 = vand.u32 %v731, 4294901760
        %733 = vmatpush.msra.mxu0 %v732
        %v734 = vand.u32 %v291, 4294901760
        %735 = vmatmul.f32.gmra.mxu0 %v734
        %v736 = vpop.f32.mrf.mxu0
        %v737 = vadd.f32 %v695, %v736
        %v738 = vand.u32 %v294, 4294901760
        %739 = vmatmul.f32.gmra.mxu0 %v738
        %v740 = vpop.f32.mrf.mxu0
        %v741 = vadd.f32 %v701, %v740
        %v742 = vand.u32 %v297, 4294901760
        %743 = vmatmul.f32.gmra.mxu0 %v742
        %v744 = vpop.f32.mrf.mxu0
        %v745 = vadd.f32 %v707, %v744
        %v746 = vand.u32 %v300, 4294901760
        %747 = vmatmul.f32.gmra.mxu0 %v746
        %v748 = vpop.f32.mrf.mxu0
        %v749 = vadd.f32 %v713, %v748
        %750 = vdwg.mxu0
        %751 = vmatpush.msra.mxu0 0.0
        %752 = vmatpush.msra.mxu0 0.0
        %753 = vmatpush.msra.mxu0 0.0
        %754 = vmatpush.msra.mxu0 0.0
        %755 = vmatpush.msra.mxu0 0.0
        %756 = vmatpush.msra.mxu0 0.0
        %757 = vmatpush.msra.mxu0 0.0
        %758 = vmatpush.msra.mxu0 0.0
        %759 = vmatpush.msra.mxu0 0.0
        %760 = vmatpush.msra.mxu0 0.0
        %761 = vmatpush.msra.mxu0 0.0
        %762 = vmatpush.msra.mxu0 0.0
        %763 = vmatpush.msra.mxu0 0.0
        %764 = vmatpush.msra.mxu0 0.0
        %765 = vmatpush.msra.mxu0 0.0
        %v766 = vand.u32 %v305, 4294901760
        %767 = vmatpush.msra.mxu0 %v766
        %v768 = vand.u32 %v291, 4294901760
        %769 = vmatmul.f32.gmra.mxu0 %v768
        %v770 = vpop.f32.mrf.mxu0
        %v771 = vadd.f32 %v737, %v770
        %v772 = vand.u32 %v294, 4294901760
        %773 = vmatmul.f32.gmra.mxu0 %v772
        %v774 = vpop.f32.mrf.mxu0
        %v775 = vadd.f32 %v741, %v774
        %v776 = vand.u32 %v297, 4294901760
        %777 = vmatmul.f32.gmra.mxu0 %v776
        %v778 = vpop.f32.mrf.mxu0
        %v779 = vadd.f32 %v745, %v778
        %v780 = vand.u32 %v300, 4294901760
        %781 = vmatmul.f32.gmra.mxu0 %v780
        %v782 = vpop.f32.mrf.mxu0
        %v783 = vadd.f32 %v749, %v782
        %784 = vdwg.mxu0
        %v785 = vmul.f32 %v532, 0.5
        %v786 = vmul.f32 %v771, 0.5
        %v787 = vmul.f32 %v536, 0.5
        %v788 = vmul.f32 %v775, 0.5
        %v789 = vmul.f32 %v540, 0.5
        %v790 = vmul.f32 %v779, 0.5
        %v791 = vmul.f32 %v544, 0.5
        %v792 = vmul.f32 %v783, 0.5
        %v793 = vmul.f32 %v532, 0.70710677
        %v794 = vmul.f32 %v771, 0.70710677
        %v795 = vmul.f32 %v536, 0.70710677
        %v796 = vmul.f32 %v775, 0.70710677
        %v797 = vmul.f32 %v540, 0.70710677
        %v798 = vmul.f32 %v779, 0.70710677
        %v799 = vmul.f32 %v544, 0.70710677
        %v800 = vmul.f32 %v783, 0.70710677
        %v801 = vand.u32 2147483647, %v793
        %v802 = vand.u32 2147483647, %v794
        %v803 = vand.u32 2147483647, %v795
        %v804 = vand.u32 2147483647, %v796
        %v805 = vand.u32 2147483647, %v797
        %v806 = vand.u32 2147483647, %v798
        %v807 = vand.u32 2147483647, %v799
        %v808 = vand.u32 2147483647, %v800
        %v809 = vmul.f32 %v801, 0.3275911
        %v810 = vmul.f32 %v802, 0.3275911
        %v811 = vmul.f32 %v803, 0.3275911
        %v812 = vmul.f32 %v804, 0.3275911
        %v813 = vmul.f32 %v805, 0.3275911
        %v814 = vmul.f32 %v806, 0.3275911
        %v815 = vmul.f32 %v807, 0.3275911
        %v816 = vmul.f32 %v808, 0.3275911
        %v817 = vadd.f32 %v809, 1.0
        %v818 = vadd.f32 %v810, 1.0
        %v819 = vadd.f32 %v811, 1.0
        %v820 = vadd.f32 %v812, 1.0
        %v821 = vadd.f32 %v813, 1.0
        %v822 = vadd.f32 %v814, 1.0
        %v823 = vadd.f32 %v815, 1.0
        %v824 = vadd.f32 %v816, 1.0
        %v825 = vrcp.pop %v817
        %v826 = vmul.f32 %v817, %v825
        %v827 = vsub.f32 1.0, %v826
        %v828 = vmul.f32 %v825, %v827
        %v829 = vadd.f32 %v825, %v828
        %vm830 = vweird.f32 %v817
        %vm831 = vweird.f32 %v825
        %vm832 = vmor %vm830, %vm831
        %v833 = vsel %vm832, %v825, %v829
        %v834 = vand.u32 2147483647, %v817
        %vm835 = vcmp.eq.f32.partialorder %v834, 8.507059e+37
        %v836 = vand.u32 %v817, 2147483648
        %v837 = vor.u32 1.1754944e-38, %v836
        %v838 = vsel %vm835, %v837, %v833
        %v839 = vmul.f32 1.0, %v838
        %v840 = vrcp.pop %v818
        %v841 = vmul.f32 %v818, %v840
        %v842 = vsub.f32 1.0, %v841
        %v843 = vmul.f32 %v840, %v842
        %v844 = vadd.f32 %v840, %v843
        %vm845 = vweird.f32 %v818
        %vm846 = vweird.f32 %v840
        %vm847 = vmor %vm845, %vm846
        %v848 = vsel %vm847, %v840, %v844
        %v849 = vand.u32 2147483647, %v818
        %vm850 = vcmp.eq.f32.partialorder %v849, 8.507059e+37
        %v851 = vand.u32 %v818, 2147483648
        %v852 = vor.u32 1.1754944e-38, %v851
        %v853 = vsel %vm850, %v852, %v848
        %v854 = vmul.f32 1.0, %v853
        %v855 = vrcp.pop %v819
        %v856 = vmul.f32 %v819, %v855
        %v857 = vsub.f32 1.0, %v856
        %v858 = vmul.f32 %v855, %v857
        %v859 = vadd.f32 %v855, %v858
        %vm860 = vweird.f32 %v819
        %vm861 = vweird.f32 %v855
        %vm862 = vmor %vm860, %vm861
        %v863 = vsel %vm862, %v855, %v859
        %v864 = vand.u32 2147483647, %v819
        %vm865 = vcmp.eq.f32.partialorder %v864, 8.507059e+37
        %v866 = vand.u32 %v819, 2147483648
        %v867 = vor.u32 1.1754944e-38, %v866
        %v868 = vsel %vm865, %v867, %v863
        %v869 = vmul.f32 1.0, %v868
        %v870 = vrcp.pop %v820
        %v871 = vmul.f32 %v820, %v870
        %v872 = vsub.f32 1.0, %v871
        %v873 = vmul.f32 %v870, %v872
        %v874 = vadd.f32 %v870, %v873
        %vm875 = vweird.f32 %v820
        %vm876 = vweird.f32 %v870
        %vm877 = vmor %vm875, %vm876
        %v878 = vsel %vm877, %v870, %v874
        %v879 = vand.u32 2147483647, %v820
        %vm880 = vcmp.eq.f32.partialorder %v879, 8.507059e+37
        %v881 = vand.u32 %v820, 2147483648
        %v882 = vor.u32 1.1754944e-38, %v881
        %v883 = vsel %vm880, %v882, %v878
        %v884 = vmul.f32 1.0, %v883
        %v885 = vrcp.pop %v821
        %v886 = vmul.f32 %v821, %v885
        %v887 = vsub.f32 1.0, %v886
        %v888 = vmul.f32 %v885, %v887
        %v889 = vadd.f32 %v885, %v888
        %vm890 = vweird.f32 %v821
        %vm891 = vweird.f32 %v885
        %vm892 = vmor %vm890, %vm891
        %v893 = vsel %vm892, %v885, %v889
        %v894 = vand.u32 2147483647, %v821
        %vm895 = vcmp.eq.f32.partialorder %v894, 8.507059e+37
        %v896 = vand.u32 %v821, 2147483648
        %v897 = vor.u32 1.1754944e-38, %v896
        %v898 = vsel %vm895, %v897, %v893
        %v899 = vmul.f32 1.0, %v898
        %v900 = vrcp.pop %v822
        %v901 = vmul.f32 %v822, %v900
        %v902 = vsub.f32 1.0, %v901
        %v903 = vmul.f32 %v900, %v902
        %v904 = vadd.f32 %v900, %v903
        %vm905 = vweird.f32 %v822
        %vm906 = vweird.f32 %v900
        %vm907 = vmor %vm905, %vm906
        %v908 = vsel %vm907, %v900, %v904
        %v909 = vand.u32 2147483647, %v822
        %vm910 = vcmp.eq.f32.partialorder %v909, 8.507059e+37
        %v911 = vand.u32 %v822, 2147483648
        %v912 = vor.u32 1.1754944e-38, %v911
        %v913 = vsel %vm910, %v912, %v908
        %v914 = vmul.f32 1.0, %v913
        %v915 = vrcp.pop %v823
        %v916 = vmul.f32 %v823, %v915
        %v917 = vsub.f32 1.0, %v916
        %v918 = vmul.f32 %v915, %v917
        %v919 = vadd.f32 %v915, %v918
        %vm920 = vweird.f32 %v823
        %vm921 = vweird.f32 %v915
        %vm922 = vmor %vm920, %vm921
        %v923 = vsel %vm922, %v915, %v919
        %v924 = vand.u32 2147483647, %v823
        %vm925 = vcmp.eq.f32.partialorder %v924, 8.507059e+37
        %v926 = vand.u32 %v823, 2147483648
        %v927 = vor.u32 1.1754944e-38, %v926
        %v928 = vsel %vm925, %v927, %v923
        %v929 = vmul.f32 1.0, %v928
        %v930 = vrcp.pop %v824
        %v931 = vmul.f32 %v824, %v930
        %v932 = vsub.f32 1.0, %v931
        %v933 = vmul.f32 %v930, %v932
        %v934 = vadd.f32 %v930, %v933
        %vm935 = vweird.f32 %v824
        %vm936 = vweird.f32 %v930
        %vm937 = vmor %vm935, %vm936
        %v938 = vsel %vm937, %v930, %v934
        %v939 = vand.u32 2147483647, %v824
        %vm940 = vcmp.eq.f32.partialorder %v939, 8.507059e+37
        %v941 = vand.u32 %v824, 2147483648
        %v942 = vor.u32 1.1754944e-38, %v941
        %v943 = vsel %vm940, %v942, %v938
        %v944 = vmul.f32 1.0, %v943
        %v945 = vmul.f32 %v839, 1.0614054
        %v946 = vmul.f32 %v854, 1.0614054
        %v947 = vmul.f32 %v869, 1.0614054
        %v948 = vmul.f32 %v884, 1.0614054
        %v949 = vmul.f32 %v899, 1.0614054
        %v950 = vmul.f32 %v914, 1.0614054
        %v951 = vmul.f32 %v929, 1.0614054
        %v952 = vmul.f32 %v944, 1.0614054
        %v953 = vadd.f32 %v945, -1.4531521
        %v954 = vadd.f32 %v946, -1.4531521
        %v955 = vadd.f32 %v947, -1.4531521
        %v956 = vadd.f32 %v948, -1.4531521
        %v957 = vadd.f32 %v949, -1.4531521
        %v958 = vadd.f32 %v950, -1.4531521
        %v959 = vadd.f32 %v951, -1.4531521
        %v960 = vadd.f32 %v952, -1.4531521
        %v961 = vmul.f32 %v953, %v839
        %v962 = vmul.f32 %v954, %v854
        %v963 = vmul.f32 %v955, %v869
        %v964 = vmul.f32 %v956, %v884
        %v965 = vmul.f32 %v957, %v899
        %v966 = vmul.f32 %v958, %v914
        %v967 = vmul.f32 %v959, %v929
        %v968 = vmul.f32 %v960, %v944
        %v969 = vadd.f32 %v961, 1.4214138
        %v970 = vadd.f32 %v962, 1.4214138
        %v971 = vadd.f32 %v963, 1.4214138
        %v972 = vadd.f32 %v964, 1.4214138
        %v973 = vadd.f32 %v965, 1.4214138
        %v974 = vadd.f32 %v966, 1.4214138
        %v975 = vadd.f32 %v967, 1.4214138
        %v976 = vadd.f32 %v968, 1.4214138
        %v977 = vmul.f32 %v969, %v839
        %v978 = vmul.f32 %v970, %v854
        %v979 = vmul.f32 %v971, %v869
        %v980 = vmul.f32 %v972, %v884
        %v981 = vmul.f32 %v973, %v899
        %v982 = vmul.f32 %v974, %v914
        %v983 = vmul.f32 %v975, %v929
        %v984 = vmul.f32 %v976, %v944
        %v985 = vadd.f32 %v977, -0.28449672
        %v986 = vadd.f32 %v978, -0.28449672
        %v987 = vadd.f32 %v979, -0.28449672
        %v988 = vadd.f32 %v980, -0.28449672
        %v989 = vadd.f32 %v981, -0.28449672
        %v990 = vadd.f32 %v982, -0.28449672
        %v991 = vadd.f32 %v983, -0.28449672
        %v992 = vadd.f32 %v984, -0.28449672
        %v993 = vmul.f32 %v985, %v839
        %v994 = vmul.f32 %v986, %v854
        %v995 = vmul.f32 %v987, %v869
        %v996 = vmul.f32 %v988, %v884
        %v997 = vmul.f32 %v989, %v899
        %v998 = vmul.f32 %v990, %v914
        %v999 = vmul.f32 %v991, %v929
        %v1000 = vmul.f32 %v992, %v944
        %v1001 = vadd.f32 %v993, 0.2548296
        %v1002 = vadd.f32 %v994, 0.2548296
        %v1003 = vadd.f32 %v995, 0.2548296
        %v1004 = vadd.f32 %v996, 0.2548296
        %v1005 = vadd.f32 %v997, 0.2548296
        %v1006 = vadd.f32 %v998, 0.2548296
        %v1007 = vadd.f32 %v999, 0.2548296
        %v1008 = vadd.f32 %v1000, 0.2548296
        %v1009 = vmul.f32 %v1001, %v839
        %v1010 = vmul.f32 %v1002, %v854
        %v1011 = vmul.f32 %v1003, %v869
        %v1012 = vmul.f32 %v1004, %v884
        %v1013 = vmul.f32 %v1005, %v899
        %v1014 = vmul.f32 %v1006, %v914
        %v1015 = vmul.f32 %v1007, %v929
        %v1016 = vmul.f32 %v1008, %v944
        %v1017 = vmul.f32 %v801, %v801
        %v1018 = vmul.f32 %v802, %v802
        %v1019 = vmul.f32 %v803, %v803
        %v1020 = vmul.f32 %v804, %v804
        %v1021 = vmul.f32 %v805, %v805
        %v1022 = vmul.f32 %v806, %v806
        %v1023 = vmul.f32 %v807, %v807
        %v1024 = vmul.f32 %v808, %v808
        %v1025 = vsub.f32 0.0, %v1017
        %v1026 = vsub.f32 0.0, %v1018
        %v1027 = vsub.f32 0.0, %v1019
        %v1028 = vsub.f32 0.0, %v1020
        %v1029 = vsub.f32 0.0, %v1021
        %v1030 = vsub.f32 0.0, %v1022
        %v1031 = vsub.f32 0.0, %v1023
        %v1032 = vsub.f32 0.0, %v1024
        %v1033 = vmul.f32 %v1025, 1.442695
        %v1034 = vpow.pop %v1033
        %v1035 = vmul.f32 %v1026, 1.442695
        %v1036 = vpow.pop %v1035
        %v1037 = vmul.f32 %v1027, 1.442695
        %v1038 = vpow.pop %v1037
        %v1039 = vmul.f32 %v1028, 1.442695
        %v1040 = vpow.pop %v1039
        %v1041 = vmul.f32 %v1029, 1.442695
        %v1042 = vpow.pop %v1041
        %v1043 = vmul.f32 %v1030, 1.442695
        %v1044 = vpow.pop %v1043
        %v1045 = vmul.f32 %v1031, 1.442695
        %v1046 = vpow.pop %v1045
        %v1047 = vmul.f32 %v1032, 1.442695
        %v1048 = vpow.pop %v1047
        %v1049 = vmul.f32 %v1009, %v1034
        %v1050 = vmul.f32 %v1010, %v1036
        %v1051 = vmul.f32 %v1011, %v1038
        %v1052 = vmul.f32 %v1012, %v1040
        %v1053 = vmul.f32 %v1013, %v1042
        %v1054 = vmul.f32 %v1014, %v1044
        %v1055 = vmul.f32 %v1015, %v1046
        %v1056 = vmul.f32 %v1016, %v1048
        %v1057 = vsub.f32 1.0, %v1049
        %v1058 = vsub.f32 1.0, %v1050
        %v1059 = vsub.f32 1.0, %v1051
        %v1060 = vsub.f32 1.0, %v1052
        %v1061 = vsub.f32 1.0, %v1053
        %v1062 = vsub.f32 1.0, %v1054
        %v1063 = vsub.f32 1.0, %v1055
        %v1064 = vsub.f32 1.0, %v1056
        %vm1065 = vcmp.lt.f32.partialorder %v793, 0.0
        %vm1066 = vcmp.lt.f32.partialorder %v794, 0.0
        %vm1067 = vcmp.lt.f32.partialorder %v795, 0.0
        %vm1068 = vcmp.lt.f32.partialorder %v796, 0.0
        %vm1069 = vcmp.lt.f32.partialorder %v797, 0.0
        %vm1070 = vcmp.lt.f32.partialorder %v798, 0.0
        %vm1071 = vcmp.lt.f32.partialorder %v799, 0.0
        %vm1072 = vcmp.lt.f32.partialorder %v800, 0.0
        %v1073 = vsub.f32 0.0, %v1057
        %v1074 = vsub.f32 0.0, %v1058
        %v1075 = vsub.f32 0.0, %v1059
        %v1076 = vsub.f32 0.0, %v1060
        %v1077 = vsub.f32 0.0, %v1061
        %v1078 = vsub.f32 0.0, %v1062
        %v1079 = vsub.f32 0.0, %v1063
        %v1080 = vsub.f32 0.0, %v1064
        %v1081 = vsel %vm1065, %v1073, %v1057
        %v1082 = vsel %vm1066, %v1074, %v1058
        %v1083 = vsel %vm1067, %v1075, %v1059
        %v1084 = vsel %vm1068, %v1076, %v1060
        %v1085 = vsel %vm1069, %v1077, %v1061
        %v1086 = vsel %vm1070, %v1078, %v1062
        %v1087 = vsel %vm1071, %v1079, %v1063
        %v1088 = vsel %vm1072, %v1080, %v1064
        %v1089 = vadd.f32 %v1081, 1.0
        %v1090 = vadd.f32 %v1082, 1.0
        %v1091 = vadd.f32 %v1083, 1.0
        %v1092 = vadd.f32 %v1084, 1.0
        %v1093 = vadd.f32 %v1085, 1.0
        %v1094 = vadd.f32 %v1086, 1.0
        %v1095 = vadd.f32 %v1087, 1.0
        %v1096 = vadd.f32 %v1088, 1.0
        %v1097 = vmul.f32 %v785, %v1089
        %v1098 = vmul.f32 %v786, %v1090
        %v1099 = vmul.f32 %v787, %v1091
        %v1100 = vmul.f32 %v788, %v1092
        %v1101 = vmul.f32 %v789, %v1093
        %v1102 = vmul.f32 %v790, %v1094
        %v1103 = vmul.f32 %v791, %v1095
        %v1104 = vmul.f32 %v792, %v1096
        %1106 = vset.pattern.permute.xlu0 0
        %1107 = vperm.xlu0 %1106, %v263
        %v1108 = vpop.permute.xlu0 %1107
        %vm1110 = vcmask 261120
        %v1112 = vsel %vm1110, %v262, 0
        %1114 = vmatpush.msra.mxu0 0.0
        %1115 = vmatpush.msra.mxu0 0.0
        %1116 = vmatpush.msra.mxu0 0.0
        %1117 = vmatpush.msra.mxu0 0.0
        %1118 = vmatpush.msra.mxu0 0.0
        %1119 = vmatpush.msra.mxu0 0.0
        %1120 = vmatpush.msra.mxu0 0.0
        %1121 = vmatpush.msra.mxu0 0.0
        %1122 = vmatpush.msra.mxu0 0.0
        %1123 = vmatpush.msra.mxu0 0.0
        %1124 = vmatpush.msra.mxu0 0.0
        %1125 = vmatpush.msra.mxu0 0.0
        %v1126 = vand.u32 %v1103, 4294901760
        %1127 = vmatpush.msra.mxu0 %v1126
        %v1128 = vand.u32 %v1101, 4294901760
        %1129 = vmatpush.msra.mxu0 %v1128
        %v1130 = vand.u32 %v1099, 4294901760
        %1131 = vmatpush.msra.mxu0 %v1130
        %v1132 = vand.u32 %v1097, 4294901760
        %1133 = vmatpush.msra.mxu0 %v1132
        %v1134 = vand.u32 %v1112, 4294901760
        %v1135 = vsub.f32 %v1112, %v1134
        %v1136 = vand.u32 %v1135, 4294901760
        %v1137 = vsub.f32 %v1135, %v1136
        %v1138 = vand.u32 %v1137, 4294901760
        %1139 = vmatmul.f32.gmra.mxu0 %v1138
        %v1140 = vpop.f32.mrf.mxu0
        %v1141 = vadd.f32 %v1108, %v1140
        %1142 = vdwg.mxu0
        %1143 = vmatpush.msra.mxu0 0.0
        %1144 = vmatpush.msra.mxu0 0.0
        %1145 = vmatpush.msra.mxu0 0.0
        %1146 = vmatpush.msra.mxu0 0.0
        %1147 = vmatpush.msra.mxu0 0.0
        %1148 = vmatpush.msra.mxu0 0.0
        %1149 = vmatpush.msra.mxu0 0.0
        %1150 = vmatpush.msra.mxu0 0.0
        %1151 = vmatpush.msra.mxu0 0.0
        %1152 = vmatpush.msra.mxu0 0.0
        %1153 = vmatpush.msra.mxu0 0.0
        %1154 = vmatpush.msra.mxu0 0.0
        %v1155 = vand.u32 %v1103, 4294901760
        %v1156 = vsub.f32 %v1103, %v1155
        %v1157 = vand.u32 %v1156, 4294901760
        %v1158 = vsub.f32 %v1156, %v1157
        %v1159 = vand.u32 %v1158, 4294901760
        %1160 = vmatpush.msra.mxu0 %v1159
        %v1161 = vand.u32 %v1101, 4294901760
        %v1162 = vsub.f32 %v1101, %v1161
        %v1163 = vand.u32 %v1162, 4294901760
        %v1164 = vsub.f32 %v1162, %v1163
        %v1165 = vand.u32 %v1164, 4294901760
        %1166 = vmatpush.msra.mxu0 %v1165
        %v1167 = vand.u32 %v1099, 4294901760
        %v1168 = vsub.f32 %v1099, %v1167
        %v1169 = vand.u32 %v1168, 4294901760
        %v1170 = vsub.f32 %v1168, %v1169
        %v1171 = vand.u32 %v1170, 4294901760
        %1172 = vmatpush.msra.mxu0 %v1171
        %v1173 = vand.u32 %v1097, 4294901760
        %v1174 = vsub.f32 %v1097, %v1173
        %v1175 = vand.u32 %v1174, 4294901760
        %v1176 = vsub.f32 %v1174, %v1175
        %v1177 = vand.u32 %v1176, 4294901760
        %1178 = vmatpush.msra.mxu0 %v1177
        %v1179 = vand.u32 %v1112, 4294901760
        %1180 = vmatmul.f32.gmra.mxu0 %v1179
        %v1181 = vpop.f32.mrf.mxu0
        %v1182 = vadd.f32 %v1141, %v1181
        %1183 = vdwg.mxu0
        %1184 = vmatpush.msra.mxu0 0.0
        %1185 = vmatpush.msra.mxu0 0.0
        %1186 = vmatpush.msra.mxu0 0.0
        %1187 = vmatpush.msra.mxu0 0.0
        %1188 = vmatpush.msra.mxu0 0.0
        %1189 = vmatpush.msra.mxu0 0.0
        %1190 = vmatpush.msra.mxu0 0.0
        %1191 = vmatpush.msra.mxu0 0.0
        %1192 = vmatpush.msra.mxu0 0.0
        %1193 = vmatpush.msra.mxu0 0.0
        %1194 = vmatpush.msra.mxu0 0.0
        %1195 = vmatpush.msra.mxu0 0.0
        %v1196 = vand.u32 %v1103, 4294901760
        %v1197 = vsub.f32 %v1103, %v1196
        %1198 = vmatpush.msra.mxu0 %v1197
        %v1199 = vand.u32 %v1101, 4294901760
        %v1200 = vsub.f32 %v1101, %v1199
        %1201 = vmatpush.msra.mxu0 %v1200
        %v1202 = vand.u32 %v1099, 4294901760
        %v1203 = vsub.f32 %v1099, %v1202
        %1204 = vmatpush.msra.mxu0 %v1203
        %v1205 = vand.u32 %v1097, 4294901760
        %v1206 = vsub.f32 %v1097, %v1205
        %1207 = vmatpush.msra.mxu0 %v1206
        %v1208 = vand.u32 %v1112, 4294901760
        %v1209 = vsub.f32 %v1112, %v1208
        %1210 = vmatmul.f32.gmra.mxu0 %v1209
        %v1211 = vpop.f32.mrf.mxu0
        %v1212 = vadd.f32 %v1182, %v1211
        %1213 = vdwg.mxu0
        %1214 = vmatpush.msra.mxu0 0.0
        %1215 = vmatpush.msra.mxu0 0.0
        %1216 = vmatpush.msra.mxu0 0.0
        %1217 = vmatpush.msra.mxu0 0.0
        %1218 = vmatpush.msra.mxu0 0.0
        %1219 = vmatpush.msra.mxu0 0.0
        %1220 = vmatpush.msra.mxu0 0.0
        %1221 = vmatpush.msra.mxu0 0.0
        %1222 = vmatpush.msra.mxu0 0.0
        %1223 = vmatpush.msra.mxu0 0.0
        %1224 = vmatpush.msra.mxu0 0.0
        %1225 = vmatpush.msra.mxu0 0.0
        %v1226 = vand.u32 %v1103, 4294901760
        %1227 = vmatpush.msra.mxu0 %v1226
        %v1228 = vand.u32 %v1101, 4294901760
        %1229 = vmatpush.msra.mxu0 %v1228
        %v1230 = vand.u32 %v1099, 4294901760
        %1231 = vmatpush.msra.mxu0 %v1230
        %v1232 = vand.u32 %v1097, 4294901760
        %1233 = vmatpush.msra.mxu0 %v1232
        %v1234 = vand.u32 %v1112, 4294901760
        %v1235 = vsub.f32 %v1112, %v1234
        %v1236 = vand.u32 %v1235, 4294901760
        %1237 = vmatmul.f32.gmra.mxu0 %v1236
        %v1238 = vpop.f32.mrf.mxu0
        %v1239 = vadd.f32 %v1212, %v1238
        %1240 = vdwg.mxu0
        %1241 = vmatpush.msra.mxu0 0.0
        %1242 = vmatpush.msra.mxu0 0.0
        %1243 = vmatpush.msra.mxu0 0.0
        %1244 = vmatpush.msra.mxu0 0.0
        %1245 = vmatpush.msra.mxu0 0.0
        %1246 = vmatpush.msra.mxu0 0.0
        %1247 = vmatpush.msra.mxu0 0.0
        %1248 = vmatpush.msra.mxu0 0.0
        %1249 = vmatpush.msra.mxu0 0.0
        %1250 = vmatpush.msra.mxu0 0.0
        %1251 = vmatpush.msra.mxu0 0.0
        %1252 = vmatpush.msra.mxu0 0.0
        %v1253 = vand.u32 %v1103, 4294901760
        %v1254 = vsub.f32 %v1103, %v1253
        %v1255 = vand.u32 %v1254, 4294901760
        %1256 = vmatpush.msra.mxu0 %v1255
        %v1257 = vand.u32 %v1101, 4294901760
        %v1258 = vsub.f32 %v1101, %v1257
        %v1259 = vand.u32 %v1258, 4294901760
        %1260 = vmatpush.msra.mxu0 %v1259
        %v1261 = vand.u32 %v1099, 4294901760
        %v1262 = vsub.f32 %v1099, %v1261
        %v1263 = vand.u32 %v1262, 4294901760
        %1264 = vmatpush.msra.mxu0 %v1263
        %v1265 = vand.u32 %v1097, 4294901760
        %v1266 = vsub.f32 %v1097, %v1265
        %v1267 = vand.u32 %v1266, 4294901760
        %1268 = vmatpush.msra.mxu0 %v1267
        %v1269 = vand.u32 %v1112, 4294901760
        %1270 = vmatmul.f32.gmra.mxu0 %v1269
        %v1271 = vpop.f32.mrf.mxu0
        %v1272 = vadd.f32 %v1239, %v1271
        %1273 = vdwg.mxu0
        %1274 = vmatpush.msra.mxu0 0.0
        %1275 = vmatpush.msra.mxu0 0.0
        %1276 = vmatpush.msra.mxu0 0.0
        %1277 = vmatpush.msra.mxu0 0.0
        %1278 = vmatpush.msra.mxu0 0.0
        %1279 = vmatpush.msra.mxu0 0.0
        %1280 = vmatpush.msra.mxu0 0.0
        %1281 = vmatpush.msra.mxu0 0.0
        %1282 = vmatpush.msra.mxu0 0.0
        %1283 = vmatpush.msra.mxu0 0.0
        %1284 = vmatpush.msra.mxu0 0.0
        %1285 = vmatpush.msra.mxu0 0.0
        %v1286 = vand.u32 %v1103, 4294901760
        %1287 = vmatpush.msra.mxu0 %v1286
        %v1288 = vand.u32 %v1101, 4294901760
        %1289 = vmatpush.msra.mxu0 %v1288
        %v1290 = vand.u32 %v1099, 4294901760
        %1291 = vmatpush.msra.mxu0 %v1290
        %v1292 = vand.u32 %v1097, 4294901760
        %1293 = vmatpush.msra.mxu0 %v1292
        %v1294 = vand.u32 %v1112, 4294901760
        %1295 = vmatmul.f32.gmra.mxu0 %v1294
        %v1296 = vpop.f32.mrf.mxu0
        %v1297 = vadd.f32 %v1272, %v1296
        %1298 = vdwg.mxu0
        %1299 = vmatpush.msra.mxu0 0.0
        %1300 = vmatpush.msra.mxu0 0.0
        %1301 = vmatpush.msra.mxu0 0.0
        %1302 = vmatpush.msra.mxu0 0.0
        %1303 = vmatpush.msra.mxu0 0.0
        %1304 = vmatpush.msra.mxu0 0.0
        %1305 = vmatpush.msra.mxu0 0.0
        %1306 = vmatpush.msra.mxu0 0.0
        %1307 = vmatpush.msra.mxu0 0.0
        %1308 = vmatpush.msra.mxu0 0.0
        %1309 = vmatpush.msra.mxu0 0.0
        %1310 = vmatpush.msra.mxu0 0.0
        %v1311 = vand.u32 %v1104, 4294901760
        %1312 = vmatpush.msra.mxu0 %v1311
        %v1313 = vand.u32 %v1102, 4294901760
        %1314 = vmatpush.msra.mxu0 %v1313
        %v1315 = vand.u32 %v1100, 4294901760
        %1316 = vmatpush.msra.mxu0 %v1315
        %v1317 = vand.u32 %v1098, 4294901760
        %1318 = vmatpush.msra.mxu0 %v1317
        %v1319 = vand.u32 %v1112, 4294901760
        %v1320 = vsub.f32 %v1112, %v1319
        %v1321 = vand.u32 %v1320, 4294901760
        %v1322 = vsub.f32 %v1320, %v1321
        %v1323 = vand.u32 %v1322, 4294901760
        %1324 = vmatmul.f32.gmra.mxu0 %v1323
        %v1325 = vpop.f32.mrf.mxu0
        %v1326 = vadd.f32 %v1108, %v1325
        %1327 = vdwg.mxu0
        %1328 = vmatpush.msra.mxu0 0.0
        %1329 = vmatpush.msra.mxu0 0.0
        %1330 = vmatpush.msra.mxu0 0.0
        %1331 = vmatpush.msra.mxu0 0.0
        %1332 = vmatpush.msra.mxu0 0.0
        %1333 = vmatpush.msra.mxu0 0.0
        %1334 = vmatpush.msra.mxu0 0.0
        %1335 = vmatpush.msra.mxu0 0.0
        %1336 = vmatpush.msra.mxu0 0.0
        %1337 = vmatpush.msra.mxu0 0.0
        %1338 = vmatpush.msra.mxu0 0.0
        %1339 = vmatpush.msra.mxu0 0.0
        %v1340 = vand.u32 %v1104, 4294901760
        %v1341 = vsub.f32 %v1104, %v1340
        %v1342 = vand.u32 %v1341, 4294901760
        %v1343 = vsub.f32 %v1341, %v1342
        %v1344 = vand.u32 %v1343, 4294901760
        %1345 = vmatpush.msra.mxu0 %v1344
        %v1346 = vand.u32 %v1102, 4294901760
        %v1347 = vsub.f32 %v1102, %v1346
        %v1348 = vand.u32 %v1347, 4294901760
        %v1349 = vsub.f32 %v1347, %v1348
        %v1350 = vand.u32 %v1349, 4294901760
        %1351 = vmatpush.msra.mxu0 %v1350
        %v1352 = vand.u32 %v1100, 4294901760
        %v1353 = vsub.f32 %v1100, %v1352
        %v1354 = vand.u32 %v1353, 4294901760
        %v1355 = vsub.f32 %v1353, %v1354
        %v1356 = vand.u32 %v1355, 4294901760
        %1357 = vmatpush.msra.mxu0 %v1356
        %v1358 = vand.u32 %v1098, 4294901760
        %v1359 = vsub.f32 %v1098, %v1358
        %v1360 = vand.u32 %v1359, 4294901760
        %v1361 = vsub.f32 %v1359, %v1360
        %v1362 = vand.u32 %v1361, 4294901760
        %1363 = vmatpush.msra.mxu0 %v1362
        %v1364 = vand.u32 %v1112, 4294901760
        %1365 = vmatmul.f32.gmra.mxu0 %v1364
        %v1366 = vpop.f32.mrf.mxu0
        %v1367 = vadd.f32 %v1326, %v1366
        %1368 = vdwg.mxu0
        %1369 = vmatpush.msra.mxu0 0.0
        %1370 = vmatpush.msra.mxu0 0.0
        %1371 = vmatpush.msra.mxu0 0.0
        %1372 = vmatpush.msra.mxu0 0.0
        %1373 = vmatpush.msra.mxu0 0.0
        %1374 = vmatpush.msra.mxu0 0.0
        %1375 = vmatpush.msra.mxu0 0.0
        %1376 = vmatpush.msra.mxu0 0.0
        %1377 = vmatpush.msra.mxu0 0.0
        %1378 = vmatpush.msra.mxu0 0.0
        %1379 = vmatpush.msra.mxu0 0.0
        %1380 = vmatpush.msra.mxu0 0.0
        %v1381 = vand.u32 %v1104, 4294901760
        %v1382 = vsub.f32 %v1104, %v1381
        %1383 = vmatpush.msra.mxu0 %v1382
        %v1384 = vand.u32 %v1102, 4294901760
        %v1385 = vsub.f32 %v1102, %v1384
        %1386 = vmatpush.msra.mxu0 %v1385
        %v1387 = vand.u32 %v1100, 4294901760
        %v1388 = vsub.f32 %v1100, %v1387
        %1389 = vmatpush.msra.mxu0 %v1388
        %v1390 = vand.u32 %v1098, 4294901760
        %v1391 = vsub.f32 %v1098, %v1390
        %1392 = vmatpush.msra.mxu0 %v1391
        %v1393 = vand.u32 %v1112, 4294901760
        %v1394 = vsub.f32 %v1112, %v1393
        %1395 = vmatmul.f32.gmra.mxu0 %v1394
        %v1396 = vpop.f32.mrf.mxu0
        %v1397 = vadd.f32 %v1367, %v1396
        %1398 = vdwg.mxu0
        %1399 = vmatpush.msra.mxu0 0.0
        %1400 = vmatpush.msra.mxu0 0.0
        %1401 = vmatpush.msra.mxu0 0.0
        %1402 = vmatpush.msra.mxu0 0.0
        %1403 = vmatpush.msra.mxu0 0.0
        %1404 = vmatpush.msra.mxu0 0.0
        %1405 = vmatpush.msra.mxu0 0.0
        %1406 = vmatpush.msra.mxu0 0.0
        %1407 = vmatpush.msra.mxu0 0.0
        %1408 = vmatpush.msra.mxu0 0.0
        %1409 = vmatpush.msra.mxu0 0.0
        %1410 = vmatpush.msra.mxu0 0.0
        %v1411 = vand.u32 %v1104, 4294901760
        %1412 = vmatpush.msra.mxu0 %v1411
        %v1413 = vand.u32 %v1102, 4294901760
        %1414 = vmatpush.msra.mxu0 %v1413
        %v1415 = vand.u32 %v1100, 4294901760
        %1416 = vmatpush.msra.mxu0 %v1415
        %v1417 = vand.u32 %v1098, 4294901760
        %1418 = vmatpush.msra.mxu0 %v1417
        %v1419 = vand.u32 %v1112, 4294901760
        %v1420 = vsub.f32 %v1112, %v1419
        %v1421 = vand.u32 %v1420, 4294901760
        %1422 = vmatmul.f32.gmra.mxu0 %v1421
        %v1423 = vpop.f32.mrf.mxu0
        %v1424 = vadd.f32 %v1397, %v1423
        %1425 = vdwg.mxu0
        %1426 = vmatpush.msra.mxu0 0.0
        %1427 = vmatpush.msra.mxu0 0.0
        %1428 = vmatpush.msra.mxu0 0.0
        %1429 = vmatpush.msra.mxu0 0.0
        %1430 = vmatpush.msra.mxu0 0.0
        %1431 = vmatpush.msra.mxu0 0.0
        %1432 = vmatpush.msra.mxu0 0.0
        %1433 = vmatpush.msra.mxu0 0.0
        %1434 = vmatpush.msra.mxu0 0.0
        %1435 = vmatpush.msra.mxu0 0.0
        %1436 = vmatpush.msra.mxu0 0.0
        %1437 = vmatpush.msra.mxu0 0.0
        %v1438 = vand.u32 %v1104, 4294901760
        %v1439 = vsub.f32 %v1104, %v1438
        %v1440 = vand.u32 %v1439, 4294901760
        %1441 = vmatpush.msra.mxu0 %v1440
        %v1442 = vand.u32 %v1102, 4294901760
        %v1443 = vsub.f32 %v1102, %v1442
        %v1444 = vand.u32 %v1443, 4294901760
        %1445 = vmatpush.msra.mxu0 %v1444
        %v1446 = vand.u32 %v1100, 4294901760
        %v1447 = vsub.f32 %v1100, %v1446
        %v1448 = vand.u32 %v1447, 4294901760
        %1449 = vmatpush.msra.mxu0 %v1448
        %v1450 = vand.u32 %v1098, 4294901760
        %v1451 = vsub.f32 %v1098, %v1450
        %v1452 = vand.u32 %v1451, 4294901760
        %1453 = vmatpush.msra.mxu0 %v1452
        %v1454 = vand.u32 %v1112, 4294901760
        %1455 = vmatmul.f32.gmra.mxu0 %v1454
        %v1456 = vpop.f32.mrf.mxu0
        %v1457 = vadd.f32 %v1424, %v1456
        %1458 = vdwg.mxu0
        %1459 = vmatpush.msra.mxu0 0.0
        %1460 = vmatpush.msra.mxu0 0.0
        %1461 = vmatpush.msra.mxu0 0.0
        %1462 = vmatpush.msra.mxu0 0.0
        %1463 = vmatpush.msra.mxu0 0.0
        %1464 = vmatpush.msra.mxu0 0.0
        %1465 = vmatpush.msra.mxu0 0.0
        %1466 = vmatpush.msra.mxu0 0.0
        %1467 = vmatpush.msra.mxu0 0.0
        %1468 = vmatpush.msra.mxu0 0.0
        %1469 = vmatpush.msra.mxu0 0.0
        %1470 = vmatpush.msra.mxu0 0.0
        %v1471 = vand.u32 %v1104, 4294901760
        %1472 = vmatpush.msra.mxu0 %v1471
        %v1473 = vand.u32 %v1102, 4294901760
        %1474 = vmatpush.msra.mxu0 %v1473
        %v1475 = vand.u32 %v1100, 4294901760
        %1476 = vmatpush.msra.mxu0 %v1475
        %v1477 = vand.u32 %v1098, 4294901760
        %1478 = vmatpush.msra.mxu0 %v1477
        %v1479 = vand.u32 %v1112, 4294901760
        %1480 = vmatmul.f32.gmra.mxu0 %v1479
        %v1481 = vpop.f32.mrf.mxu0
        %v1482 = vadd.f32 %v1457, %v1481
        %1483 = vdwg.mxu0
        %v1486 = vrot.slane %v1482, 4
        %v1487 = vsel %vm302, %v1297, %v1486
        %1489 = vst [vmem:[%s242] sm:$0xff] %v1487
        %s1490 = sand.u32 %s153, 1
        %s1491 = scalar_lea.sflag [#allocation3], %s1490
        %s1492 = sand.u32 %s153, 1
        %s1493 = smul.addr %s1492, 8
        %s1494 = scalar_lea.vmem [#allocation2], %s1493
        // Predicated region
        $region41: #{tpu_custom_call.1} parent=39 // pred_check
          %p1495 = pneg %p163
        $region42: #{tpu_custom_call.1} parent=39 // pred_check_branch
          %1497 = sbr.rel (%p1495) target = $region44
        $region43: #{tpu_custom_call.1} parent=39 // pred_region
          %s1498 = smul.u32 2, %s24
          %1500 = vsyncadd %s1491, 0
          %s1501 = smul.addr %s23, 2
          %s1502 = sadd.s32 %s1498, %s1501
          %s1503 = smul.addr %s1502, 4
          %s1504 = scalar_lea.hbm %s5, %s1503
          %s1506 = sshll.u32 %s1494, 4
          %s1507 = int_to_ptr.vmem [resolvable:$true] %s1506
          %s1508 = sshll.u32 %s1504, 4
          %s1509 = int_to_ptr.hbm [resolvable:$true] %s1508
          %1511 = dma.vmem_to_hbm [thread:$0]  %s1507, 128, %s1509, %s1491
        $region44: #{tpu_custom_call.1} parent=39 // pred_fallthru
          _
      $region40: #{tpu_custom_call.1} parent=5 // pred_fallthru
        _
      %p1512 = scmp.le.s32.totalorder 2, %s14
      // Predicated region
      $region45: #{tpu_custom_call.1} parent=5 // pred_check
        %p1513 = pneg %p1512
      $region46: #{tpu_custom_call.1} parent=5 // pred_check_branch
        %1515 = sbr.rel (%p1513) target = $region48
      $region47: #{tpu_custom_call.1} parent=5 // pred_region
        %s1516 = ssub.s32 %s14, 2
        // Predicated region
        $region49: #{tpu_custom_call.1} parent=47 // pred_check
          %p1517 = pneg %p169
        $region50: #{tpu_custom_call.1} parent=47 // pred_check_branch
          %1519 = sbr.rel (%p1517) target = $region52
        $region51: #{tpu_custom_call.1} parent=47 // pred_region
          %s1520 = sand.u32 %s154, 1
          %s1521 = scalar_lea.sflag [#allocation3], %s1520
          %s1522 = sand.u32 %s154, 1
          %s1523 = smul.addr %s1522, 8
          %s1524 = scalar_lea.vmem [#allocation2], %s1523
          %1526 = dma.done %s1521, 128
        $region52: #{tpu_custom_call.1} parent=47 // pred_fallthru
          _
      $region48: #{tpu_custom_call.1} parent=5 // pred_fallthru
        _
    $region6: #{tpu_custom_call.1} parent=1 // loop_footer
      %s18 = sadd.s32 1, %s14
    $region7: #{tpu_custom_call.1} parent=1 // loop_footer_branch
      %13 = sbr.rel target = $region3
    $region8: #{tpu_custom_call.1} parent=1 // loop_exit
      _
    %1527 = vsyncpa [#allocation3], 1
    %s1528 = scalar_lea.sflag [#allocation3], 1
    %1529 = vsyncpa %s1528, 1

</llo_original>
